<compile_context>
chip_gen: v7x
topology: tpu7x:2x2x1
jax: 0.10.0
libtpu: 0.0.40
codegen_flags: <defaults>
</compile_context>

<pallas_src>
import functools

import jax
import jax.numpy as jnp
from jax import lax
from jax.experimental import pallas as pl
from jax.experimental.pallas import tpu as pltpu


# ---------------------------------------------------------------------------
# Kernel A: fused QKV proj + per-head attention + out proj + AddNorm1
#           grid = (batch, q-row tiles), both "parallel"
# ---------------------------------------------------------------------------
def _attn_addnorm_kernel(
    xq_ref,            # (1, TQ, D)  q-rows of x (also the residual)
    xkv_ref,           # (1, S, D)   full sequence (for K / V)
    wq_ref, bq_ref,    # (D, D) bf16, (1, D) f32
    wk_ref, bk_ref,
    wv_ref, bv_ref,
    wo_ref, bo_ref,
    g1_ref, be1_ref,   # LayerNorm scale / shift, (1, D) f32
    out_ref,           # (1, TQ, D)
    *, num_heads, eps,
):
    xq_f32 = xq_ref[0].astype(jnp.float32)                  # residual, f32
    xq_bf = xq_ref[0].astype(jnp.bfloat16)                  # (TQ, D)
    xkv_bf = xkv_ref[0].astype(jnp.bfloat16)                # (S, D)
    D = xq_bf.shape[-1]
    head_dim = D // num_heads
    scale = 1.0 / (head_dim ** 0.5)

    def proj(t_bf, w_ref, b_ref):
        # bf16 x bf16 -> f32 accumulation on the MXU; bias added in f32.
        return (jnp.dot(t_bf, w_ref[...].astype(jnp.bfloat16),
                        preferred_element_type=jnp.float32)
                + b_ref[...].astype(jnp.float32))

    q = proj(xq_bf, wq_ref, bq_ref)                         # (TQ, D) f32
    k = proj(xkv_bf, wk_ref, bk_ref)                        # (S,  D) f32
    v = proj(xkv_bf, wv_ref, bv_ref)                        # (S,  D) f32

    # Per-head attention with the output projection folded into the loop:
    #   acc += softmax(q_h k_h^T / sqrt(dh)) v_h @ Wo[h*dh:(h+1)*dh, :]
    # head_dim is a multiple of 128 so every slice is lane-aligned & static.
    acc = jnp.zeros((xq_bf.shape[0], D), jnp.float32)
    for h in range(num_heads):
        lo = h * head_dim
        qh = q[:, lo:lo + head_dim].astype(jnp.bfloat16)    # (TQ, dh)
        kh = k[:, lo:lo + head_dim].astype(jnp.bfloat16)    # (S,  dh)
        vh = v[:, lo:lo + head_dim].astype(jnp.bfloat16)    # (S,  dh)

        # scores[q, k] = <qh[q], kh[k]> (contract head_dim, no explicit .T)
        s = lax.dot_general(
            qh, kh,
            dimension_numbers=(((1,), (1,)), ((), ())),
            preferred_element_type=jnp.float32,
        ) * scale                                           # (TQ, S) f32

        m = jnp.max(s, axis=-1, keepdims=True)
        p = jnp.exp(s - m)                                  # unnormalized, f32
        inv_l = pl.reciprocal(jnp.sum(p, axis=-1, keepdims=True), approx=True)

        ctx_h = jnp.dot(p.astype(jnp.bfloat16), vh,
                        preferred_element_type=jnp.float32) * inv_l   # (TQ, dh)
        acc = acc + jnp.dot(
            ctx_h.astype(jnp.bfloat16),
            wo_ref[lo:lo + head_dim, :].astype(jnp.bfloat16),
            preferred_element_type=jnp.float32)             # (TQ, D)

    attn_out = acc + bo_ref[...].astype(jnp.float32)

    # AddNorm 1: LayerNorm(x + attn_out), statistics in f32.
    y = xq_f32 + attn_out
    mean = jnp.mean(y, axis=-1, keepdims=True)
    yc = y - mean
    var = jnp.mean(yc * yc, axis=-1, keepdims=True)
    inv = lax.rsqrt(var + eps)
    out_ref[0] = (yc * inv * g1_ref[...].astype(jnp.float32)
                  + be1_ref[...].astype(jnp.float32)).astype(out_ref.dtype)


# ---------------------------------------------------------------------------
# Kernel B: FFN (Linear-ReLU-Linear) + AddNorm2
#           grid = (token tiles, d_ff tiles), d_ff axis is the reduction
# ---------------------------------------------------------------------------
def _ffn_addnorm_kernel(
    x_ref,             # (T, D)
    w1_ref, b1_ref,    # (D, TF) bf16, (1, TF) f32
    w2_ref,            # (TF, D) bf16
    b2_ref, g2_ref, be2_ref,   # (1, D) f32
    out_ref,           # (T, D)
    acc_ref,           # (T, D) f32 scratch
    *, eps,
):
    kf = pl.program_id(1)

    @pl.when(kf == 0)
    def _():
        acc_ref[...] = jnp.zeros_like(acc_ref)

    x_bf = x_ref[...].astype(jnp.bfloat16)
    h = jnp.maximum(
        jnp.dot(x_bf, w1_ref[...].astype(jnp.bfloat16),
                preferred_element_type=jnp.float32)
        + b1_ref[...].astype(jnp.float32),
        0.0,
    )                                                       # (T, TF) f32
    acc_ref[...] += jnp.dot(h.astype(jnp.bfloat16),
                            w2_ref[...].astype(jnp.bfloat16),
                            preferred_element_type=jnp.float32)

    @pl.when(kf == pl.num_programs(1) - 1)
    def _():
        x_f32 = x_ref[...].astype(jnp.float32)
        f = acc_ref[...] + b2_ref[...].astype(jnp.float32)
        y = x_f32 + f
        mean = jnp.mean(y, axis=-1, keepdims=True)
        yc = y - mean
        var = jnp.mean(yc * yc, axis=-1, keepdims=True)
        inv = lax.rsqrt(var + eps)
        out_ref[...] = (yc * inv * g2_ref[...].astype(jnp.float32)
                        + be2_ref[...].astype(jnp.float32)).astype(out_ref.dtype)


# ---------------------------------------------------------------------------
# Wrapper
# ---------------------------------------------------------------------------
def transformer_encoder_layer(x, params, *, num_heads, eps=1e-6,
                              seq_tile=256, token_tile=512, ff_tile=512):
    """Pallas equivalent of TransformerEncoderLayer.forward(x)."""
    B, S, D = x.shape
    F = params["w1"].shape[1]
    assert D % num_heads == 0
    assert D % 128 == 0 and F % 128 == 0, "keep lane dims multiples of 128"
    assert (D // num_heads) % 128 == 0, "head_dim must be a multiple of 128"

    vmem_bytes = 64 * 1024 * 1024

    # ---- Kernel A: attention + AddNorm1 ------------------------------------
    TQ = S if S <= seq_tile else seq_tile
    assert S % TQ == 0, "seq length must divide the q tile"
    rep2 = lambda b, qi: (0, 0)
    wspec = lambda shp: pl.BlockSpec(shp, rep2, pipeline_mode=pl.Buffered(1))

    flops_a = int(B * (8 * S * D * D + 4 * S * S * D))
    trans_a = int(B * num_heads * S * S + 2 * B * S)
    bytes_a = int(4 * B * S * D * (2 + S // TQ) + 2 * 4 * D * D + 4 * 8 * D)

    y = pl.pallas_call(
        functools.partial(_attn_addnorm_kernel, num_heads=num_heads, eps=eps),
        out_shape=jax.ShapeDtypeStruct((B, S, D), x.dtype),
        grid=(B, S // TQ),
        in_specs=[
            pl.BlockSpec((1, TQ, D), lambda b, qi: (b, qi, 0)),   # q rows / residual
            pl.BlockSpec((1, S, D), lambda b, qi: (b, 0, 0)),     # full seq for K/V
            wspec((D, D)), wspec((1, D)),                         # q proj
            wspec((D, D)), wspec((1, D)),                         # k proj
            wspec((D, D)), wspec((1, D)),                         # v proj
            wspec((D, D)), wspec((1, D)),                         # out proj
            wspec((1, D)), wspec((1, D)),                         # ln1 g / b
        ],
        out_specs=pl.BlockSpec((1, TQ, D), lambda b, qi: (b, qi, 0)),
        compiler_params=pltpu.CompilerParams(
            dimension_semantics=("parallel", "parallel"),
            vmem_limit_bytes=vmem_bytes),
        cost_estimate=pl.CostEstimate(
            flops=flops_a, transcendentals=trans_a, bytes_accessed=bytes_a),
    )(
        x, x,
        params["wq"], params["bq"],
        params["wk"], params["bk"],
        params["wv"], params["bv"],
        params["wo"], params["bo"],
        params["g1"], params["be1"],
    )

    # ---- Kernel B: FFN + AddNorm2, token tiles x d_ff tiles -----------------
    BS = B * S
    T = min(token_tile, BS)
    TF = min(ff_tile, F)
    assert BS % T == 0, "token count must divide the token tile"
    assert F % TF == 0, "d_ff must divide the ff tile"
    y2d = y.reshape(BS, D)

    rep_b = lambda i, k: (0, 0)
    flops_b = int(4 * BS * D * F)
    bytes_b = int(4 * BS * D * 2 + 2 * 2 * D * F + 4 * 4 * D)

    out2d = pl.pallas_call(
        functools.partial(_ffn_addnorm_kernel, eps=eps),
        out_shape=jax.ShapeDtypeStruct((BS, D), x.dtype),
        grid=(BS // T, F // TF),
        in_specs=[
            pl.BlockSpec((T, D), lambda i, k: (i, 0)),            # activations
            pl.BlockSpec((D, TF), lambda i, k: (0, k)),           # W1 f-tile
            pl.BlockSpec((1, TF), lambda i, k: (0, k)),           # b1 f-tile
            pl.BlockSpec((TF, D), lambda i, k: (k, 0)),           # W2 f-tile
            pl.BlockSpec((1, D), rep_b, pipeline_mode=pl.Buffered(1)),  # b2
            pl.BlockSpec((1, D), rep_b, pipeline_mode=pl.Buffered(1)),  # ln2 g
            pl.BlockSpec((1, D), rep_b, pipeline_mode=pl.Buffered(1)),  # ln2 b
        ],
        out_specs=pl.BlockSpec((T, D), lambda i, k: (i, 0)),
        scratch_shapes=[pltpu.VMEM((T, D), jnp.float32)],
        compiler_params=pltpu.CompilerParams(
            dimension_semantics=("parallel", "arbitrary"),
            vmem_limit_bytes=vmem_bytes),
        cost_estimate=pl.CostEstimate(
            flops=flops_b, transcendentals=0, bytes_accessed=bytes_b),
    )(y2d, params["w1"], params["b1"], params["w2"],
      params["b2"], params["g2"], params["be2"])

    return out2d.reshape(B, S, D)


# ---------------------------------------------------------------------------
# Pure-JAX f32 reference (mirrors the PyTorch module exactly)
# ---------------------------------------------------------------------------
def ref_transformer_encoder_layer(x, p, *, num_heads, eps=1e-6):
    B, S, D = x.shape
    Dh = D // num_heads

    def lin(t, w, b):
        return t @ w.astype(jnp.float32) + b.astype(jnp.float32)

    def ln(t, g, b):
        m = jnp.mean(t, axis=-1, keepdims=True)
        var = jnp.mean((t - m) ** 2, axis=-1, keepdims=True)
        return (t - m) / jnp.sqrt(var + eps) * g + b

    q = lin(x, p["wq"], p["bq"]).reshape(B, S, num_heads, Dh).transpose(0, 2, 1, 3)
    k = lin(x, p["wk"], p["bk"]).reshape(B, S, num_heads, Dh).transpose(0, 2, 1, 3)
    v = lin(x, p["wv"], p["bv"]).reshape(B, S, num_heads, Dh).transpose(0, 2, 1, 3)

    scores = jnp.einsum("bhqd,bhkd->bhqk", q, k) / (Dh ** 0.5)
    w = jax.nn.softmax(scores, axis=-1)
    ctx = jnp.einsum("bhqk,bhkd->bhqd", w, v).transpose(0, 2, 1, 3).reshape(B, S, D)
    attn = lin(ctx, p["wo"], p["bo"])

    y = ln(x + attn, p["g1"], p["be1"])
    h = jnp.maximum(lin(y, p["w1"], p["b1"]), 0.0)
    f = lin(h, p["w2"], p["b2"])
    return ln(y + f, p["g2"], p["be2"])


if __name__ == "__main__":
    # Small, lane-friendly shapes: batch=2, seq=8, d_model=256 (2 heads of
    # head_dim=128), d_ff=512.
    B, S, D, H, F = 2, 8, 256, 2, 512

    key = jax.random.PRNGKey(0)
    ks = jax.random.split(key, 12)

    def w(k, shape, scale=0.05, dtype=jnp.float32):
        return (scale * jax.random.normal(k, shape, dtype=jnp.float32)).astype(dtype)

    params = {
        # Linear weights stored in (in, out) layout and bf16 (MXU operand dtype);
        # biases and LayerNorm params stay f32 (added / applied in f32).
        "wq": w(ks[0], (D, D), dtype=jnp.bfloat16), "bq": w(ks[1], (1, D), 0.01),
        "wk": w(ks[2], (D, D), dtype=jnp.bfloat16), "bk": w(ks[3], (1, D), 0.01),
        "wv": w(ks[4], (D, D), dtype=jnp.bfloat16), "bv": w(ks[5], (1, D), 0.01),
        "wo": w(ks[6], (D, D), dtype=jnp.bfloat16), "bo": w(ks[7], (1, D), 0.01),
        "w1": w(ks[8], (D, F), dtype=jnp.bfloat16), "b1": w(ks[9], (1, F), 0.01),
        "w2": w(ks[10], (F, D), dtype=jnp.bfloat16), "b2": w(ks[11], (1, D), 0.01),
        # LayerNorm params (torch default init: weight=1, bias=0); AddNorm eps=1e-6.
        "g1": jnp.ones((1, D), jnp.float32), "be1": jnp.zeros((1, D), jnp.float32),
        "g2": jnp.ones((1, D), jnp.float32), "be2": jnp.zeros((1, D), jnp.float32),
    }

    x = jax.random.normal(jax.random.PRNGKey(42), (B, S, D), dtype=jnp.float32)

    out = transformer_encoder_layer(x, params, num_heads=H)
    out = jax.block_until_ready(out)

    ref = ref_transformer_encoder_layer(x, params, num_heads=H)

    assert out.shape == (B, S, D), out.shape
    # Tolerance accounts for bf16 MXU operands + approx reciprocal in softmax
    # (f32 accumulation / statistics keep the error well inside this bound).
    assert jnp.allclose(out, ref, atol=3e-2, rtol=3e-2), (
        "Pallas TransformerEncoderLayer mismatch; max abs err = "
        f"{float(jnp.max(jnp.abs(out - ref)))}"
    )

    print("KERNEL_OK")
</pallas_src>

<mosaic_0001>
module attributes {stable_mosaic.version = 11 : i64} {
  func.func @_attn_addnorm_kernel(%arg0: i32, %arg1: i32, %arg2: memref<1x8x256xf32, #tpu.memory_space<vmem>>, %arg3: memref<1x8x256xf32, #tpu.memory_space<vmem>>, %arg4: memref<256x256xbf16, #tpu.memory_space<vmem>>, %arg5: memref<1x256xf32, #tpu.memory_space<vmem>>, %arg6: memref<256x256xbf16, #tpu.memory_space<vmem>>, %arg7: memref<1x256xf32, #tpu.memory_space<vmem>>, %arg8: memref<256x256xbf16, #tpu.memory_space<vmem>>, %arg9: memref<1x256xf32, #tpu.memory_space<vmem>>, %arg10: memref<256x256xbf16, #tpu.memory_space<vmem>>, %arg11: memref<1x256xf32, #tpu.memory_space<vmem>>, %arg12: memref<1x256xf32, #tpu.memory_space<vmem>>, %arg13: memref<1x256xf32, #tpu.memory_space<vmem>>, %arg14: memref<1x8x256xf32, #tpu.memory_space<vmem>>) attributes {dimension_semantics = [#tpu.dimension_semantics<parallel>, #tpu.dimension_semantics<parallel>], iteration_bounds = array<i64: 2, 1>, scalar_prefetch = 0 : i64, scratch_operands = 0 : i64, tpu.core_type = #tpu.core_type<tc>, window_params = [{transform_indices = @transform_0, window_bounds = array<i64: 1, 8, 256>}, {transform_indices = @transform_1, window_bounds = array<i64: 1, 8, 256>}, {pipeline_mode = #tpu.pipeline_mode<synchronous>, transform_indices = @transform_2, window_bounds = array<i64: 256, 256>}, {pipeline_mode = #tpu.pipeline_mode<synchronous>, transform_indices = @transform_3, window_bounds = array<i64: 1, 256>}, {pipeline_mode = #tpu.pipeline_mode<synchronous>, transform_indices = @transform_4, window_bounds = array<i64: 256, 256>}, {pipeline_mode = #tpu.pipeline_mode<synchronous>, transform_indices = @transform_5, window_bounds = array<i64: 1, 256>}, {pipeline_mode = #tpu.pipeline_mode<synchronous>, transform_indices = @transform_6, window_bounds = array<i64: 256, 256>}, {pipeline_mode = #tpu.pipeline_mode<synchronous>, transform_indices = @transform_7, window_bounds = array<i64: 1, 256>}, {pipeline_mode = #tpu.pipeline_mode<synchronous>, transform_indices = @transform_8, window_bounds = array<i64: 256, 256>}, {pipeline_mode = #tpu.pipeline_mode<synchronous>, transform_indices = @transform_9, window_bounds = array<i64: 1, 256>}, {pipeline_mode = #tpu.pipeline_mode<synchronous>, transform_indices = @transform_10, window_bounds = array<i64: 1, 256>}, {pipeline_mode = #tpu.pipeline_mode<synchronous>, transform_indices = @transform_11, window_bounds = array<i64: 1, 256>}, {transform_indices = @transform_12, window_bounds = array<i64: 1, 8, 256>}]} {
    %c0 = arith.constant 0 : index
    %c0_0 = arith.constant 0 : index
    %c0_1 = arith.constant 0 : index
    %0 = vector.load %arg2[%c0, %c0_0, %c0_1] : memref<1x8x256xf32, #tpu.memory_space<vmem>>, vector<1x8x256xf32>
    %1 = vector.shape_cast %0 : vector<1x8x256xf32> to vector<8x256xf32>
    %c0_2 = arith.constant 0 : index
    %c0_3 = arith.constant 0 : index
    %c0_4 = arith.constant 0 : index
    %2 = vector.load %arg2[%c0_2, %c0_3, %c0_4] : memref<1x8x256xf32, #tpu.memory_space<vmem>>, vector<1x8x256xf32>
    %3 = vector.shape_cast %2 : vector<1x8x256xf32> to vector<8x256xf32>
    %4 = arith.truncf %3 : vector<8x256xf32> to vector<8x256xbf16>
    %c0_5 = arith.constant 0 : index
    %c0_6 = arith.constant 0 : index
    %c0_7 = arith.constant 0 : index
    %5 = vector.load %arg3[%c0_5, %c0_6, %c0_7] : memref<1x8x256xf32, #tpu.memory_space<vmem>>, vector<1x8x256xf32>
    %6 = vector.shape_cast %5 : vector<1x8x256xf32> to vector<8x256xf32>
    %7 = arith.truncf %6 : vector<8x256xf32> to vector<8x256xbf16>
    %c0_8 = arith.constant 0 : index
    %c0_9 = arith.constant 0 : index
    %8 = vector.load %arg4[%c0_8, %c0_9] : memref<256x256xbf16, #tpu.memory_space<vmem>>, vector<256x256xbf16>
    %cst = arith.constant dense<0.000000e+00> : vector<8x256xf32>
    %9 = tpu.matmul %4, %8, %cst {dimension_numbers = #tpu.dot_dimension_numbers<[1], [0], [0], [1], [0, 0, 1, 1], [], []>} : vector<8x256xbf16>, vector<256x256xbf16>, vector<8x256xf32> -> vector<8x256xf32>
    %c0_10 = arith.constant 0 : index
    %c0_11 = arith.constant 0 : index
    %10 = vector.load %arg5[%c0_10, %c0_11] : memref<1x256xf32, #tpu.memory_space<vmem>>, vector<1x256xf32>
    %11 = vector.broadcast %10 : vector<1x256xf32> to vector<8x256xf32>
    %12 = arith.addf %9, %11 : vector<8x256xf32>
    %c0_12 = arith.constant 0 : index
    %c0_13 = arith.constant 0 : index
    %13 = vector.load %arg6[%c0_12, %c0_13] : memref<256x256xbf16, #tpu.memory_space<vmem>>, vector<256x256xbf16>
    %cst_14 = arith.constant dense<0.000000e+00> : vector<8x256xf32>
    %14 = tpu.matmul %7, %13, %cst_14 {dimension_numbers = #tpu.dot_dimension_numbers<[1], [0], [0], [1], [0, 0, 1, 1], [], []>} : vector<8x256xbf16>, vector<256x256xbf16>, vector<8x256xf32> -> vector<8x256xf32>
    %c0_15 = arith.constant 0 : index
    %c0_16 = arith.constant 0 : index
    %15 = vector.load %arg7[%c0_15, %c0_16] : memref<1x256xf32, #tpu.memory_space<vmem>>, vector<1x256xf32>
    %16 = vector.broadcast %15 : vector<1x256xf32> to vector<8x256xf32>
    %17 = arith.addf %14, %16 : vector<8x256xf32>
    %c0_17 = arith.constant 0 : index
    %c0_18 = arith.constant 0 : index
    %18 = vector.load %arg8[%c0_17, %c0_18] : memref<256x256xbf16, #tpu.memory_space<vmem>>, vector<256x256xbf16>
    %cst_19 = arith.constant dense<0.000000e+00> : vector<8x256xf32>
    %19 = tpu.matmul %7, %18, %cst_19 {dimension_numbers = #tpu.dot_dimension_numbers<[1], [0], [0], [1], [0, 0, 1, 1], [], []>} : vector<8x256xbf16>, vector<256x256xbf16>, vector<8x256xf32> -> vector<8x256xf32>
    %c0_20 = arith.constant 0 : index
    %c0_21 = arith.constant 0 : index
    %20 = vector.load %arg9[%c0_20, %c0_21] : memref<1x256xf32, #tpu.memory_space<vmem>>, vector<1x256xf32>
    %21 = vector.broadcast %20 : vector<1x256xf32> to vector<8x256xf32>
    %22 = arith.addf %19, %21 : vector<8x256xf32>
    %cst_22 = arith.constant 0.000000e+00 : f32
    %23 = vector.broadcast %cst_22 : f32 to vector<8x256xf32>
    %24 = vector.extract_strided_slice %12 {offsets = [0, 0], sizes = [8, 128], strides = [1, 1]} : vector<8x256xf32> to vector<8x128xf32>
    %25 = arith.truncf %24 : vector<8x128xf32> to vector<8x128xbf16>
    %26 = vector.extract_strided_slice %17 {offsets = [0, 0], sizes = [8, 128], strides = [1, 1]} : vector<8x256xf32> to vector<8x128xf32>
    %27 = arith.truncf %26 : vector<8x128xf32> to vector<8x128xbf16>
    %28 = vector.extract_strided_slice %22 {offsets = [0, 0], sizes = [8, 128], strides = [1, 1]} : vector<8x256xf32> to vector<8x128xf32>
    %29 = arith.truncf %28 : vector<8x128xf32> to vector<8x128xbf16>
    %cst_23 = arith.constant dense<0.000000e+00> : vector<8x8xf32>
    %30 = tpu.matmul %25, %27, %cst_23 {dimension_numbers = #tpu.dot_dimension_numbers<[1], [1], [0], [0], [0, 0, 1, 0], [], []>} : vector<8x128xbf16>, vector<8x128xbf16>, vector<8x8xf32> -> vector<8x8xf32>
    %cst_24 = arith.constant 0.0883883461 : f32
    %31 = vector.broadcast %cst_24 : f32 to vector<8x8xf32>
    %32 = arith.mulf %30, %31 : vector<8x8xf32>
    %cst_25 = arith.constant dense<0xFF800000> : vector<8xf32>
    %33 = vector.multi_reduction <maximumf>, %32, %cst_25 [1] : vector<8x8xf32> to vector<8xf32>
    %34 = vector.shape_cast %33 : vector<8xf32> to vector<8x1xf32>
    %35 = vector.broadcast %34 : vector<8x1xf32> to vector<8x8xf32>
    %36 = arith.subf %32, %35 : vector<8x8xf32>
    %37 = math.exp %36 : vector<8x8xf32>
    %cst_26 = arith.constant dense<0.000000e+00> : vector<8xf32>
    %38 = vector.multi_reduction <add>, %37, %cst_26 [1] : vector<8x8xf32> to vector<8xf32>
    %39 = vector.shape_cast %38 : vector<8xf32> to vector<8x1xf32>
    %40 = tpu.reciprocal %39 {approx = true} : vector<8x1xf32> -> vector<8x1xf32>
    %41 = arith.truncf %37 : vector<8x8xf32> to vector<8x8xbf16>
    %cst_27 = arith.constant dense<0.000000e+00> : vector<8x128xf32>
    %42 = tpu.matmul %41, %29, %cst_27 {dimension_numbers = #tpu.dot_dimension_numbers<[1], [0], [0], [1], [0, 0, 1, 1], [], []>} : vector<8x8xbf16>, vector<8x128xbf16>, vector<8x128xf32> -> vector<8x128xf32>
    %43 = vector.broadcast %40 : vector<8x1xf32> to vector<8x128xf32>
    %44 = arith.mulf %42, %43 : vector<8x128xf32>
    %45 = arith.truncf %44 : vector<8x128xf32> to vector<8x128xbf16>
    %c0_28 = arith.constant 0 : index
    %c0_29 = arith.constant 0 : index
    %46 = vector.load %arg10[%c0_28, %c0_29] : memref<256x256xbf16, #tpu.memory_space<vmem>>, vector<128x256xbf16>
    %cst_30 = arith.constant dense<0.000000e+00> : vector<8x256xf32>
    %47 = tpu.matmul %45, %46, %cst_30 {dimension_numbers = #tpu.dot_dimension_numbers<[1], [0], [0], [1], [0, 0, 1, 1], [], []>} : vector<8x128xbf16>, vector<128x256xbf16>, vector<8x256xf32> -> vector<8x256xf32>
    %48 = arith.addf %23, %47 : vector<8x256xf32>
    %49 = vector.extract_strided_slice %12 {offsets = [0, 128], sizes = [8, 128], strides = [1, 1]} : vector<8x256xf32> to vector<8x128xf32>
    %50 = arith.truncf %49 : vector<8x128xf32> to vector<8x128xbf16>
    %51 = vector.extract_strided_slice %17 {offsets = [0, 128], sizes = [8, 128], strides = [1, 1]} : vector<8x256xf32> to vector<8x128xf32>
    %52 = arith.truncf %51 : vector<8x128xf32> to vector<8x128xbf16>
    %53 = vector.extract_strided_slice %22 {offsets = [0, 128], sizes = [8, 128], strides = [1, 1]} : vector<8x256xf32> to vector<8x128xf32>
    %54 = arith.truncf %53 : vector<8x128xf32> to vector<8x128xbf16>
    %cst_31 = arith.constant dense<0.000000e+00> : vector<8x8xf32>
    %55 = tpu.matmul %50, %52, %cst_31 {dimension_numbers = #tpu.dot_dimension_numbers<[1], [1], [0], [0], [0, 0, 1, 0], [], []>} : vector<8x128xbf16>, vector<8x128xbf16>, vector<8x8xf32> -> vector<8x8xf32>
    %cst_32 = arith.constant 0.0883883461 : f32
    %56 = vector.broadcast %cst_32 : f32 to vector<8x8xf32>
    %57 = arith.mulf %55, %56 : vector<8x8xf32>
    %cst_33 = arith.constant dense<0xFF800000> : vector<8xf32>
    %58 = vector.multi_reduction <maximumf>, %57, %cst_33 [1] : vector<8x8xf32> to vector<8xf32>
    %59 = vector.shape_cast %58 : vector<8xf32> to vector<8x1xf32>
    %60 = vector.broadcast %59 : vector<8x1xf32> to vector<8x8xf32>
    %61 = arith.subf %57, %60 : vector<8x8xf32>
    %62 = math.exp %61 : vector<8x8xf32>
    %cst_34 = arith.constant dense<0.000000e+00> : vector<8xf32>
    %63 = vector.multi_reduction <add>, %62, %cst_34 [1] : vector<8x8xf32> to vector<8xf32>
    %64 = vector.shape_cast %63 : vector<8xf32> to vector<8x1xf32>
    %65 = tpu.reciprocal %64 {approx = true} : vector<8x1xf32> -> vector<8x1xf32>
    %66 = arith.truncf %62 : vector<8x8xf32> to vector<8x8xbf16>
    %cst_35 = arith.constant dense<0.000000e+00> : vector<8x128xf32>
    %67 = tpu.matmul %66, %54, %cst_35 {dimension_numbers = #tpu.dot_dimension_numbers<[1], [0], [0], [1], [0, 0, 1, 1], [], []>} : vector<8x8xbf16>, vector<8x128xbf16>, vector<8x128xf32> -> vector<8x128xf32>
    %68 = vector.broadcast %65 : vector<8x1xf32> to vector<8x128xf32>
    %69 = arith.mulf %67, %68 : vector<8x128xf32>
    %70 = arith.truncf %69 : vector<8x128xf32> to vector<8x128xbf16>
    %c128 = arith.constant 128 : index
    %c0_36 = arith.constant 0 : index
    %71 = vector.load %arg10[%c128, %c0_36] : memref<256x256xbf16, #tpu.memory_space<vmem>>, vector<128x256xbf16>
    %cst_37 = arith.constant dense<0.000000e+00> : vector<8x256xf32>
    %72 = tpu.matmul %70, %71, %cst_37 {dimension_numbers = #tpu.dot_dimension_numbers<[1], [0], [0], [1], [0, 0, 1, 1], [], []>} : vector<8x128xbf16>, vector<128x256xbf16>, vector<8x256xf32> -> vector<8x256xf32>
    %73 = arith.addf %48, %72 : vector<8x256xf32>
    %c0_38 = arith.constant 0 : index
    %c0_39 = arith.constant 0 : index
    %74 = vector.load %arg11[%c0_38, %c0_39] : memref<1x256xf32, #tpu.memory_space<vmem>>, vector<1x256xf32>
    %75 = vector.broadcast %74 : vector<1x256xf32> to vector<8x256xf32>
    %76 = arith.addf %73, %75 : vector<8x256xf32>
    %77 = arith.addf %1, %76 : vector<8x256xf32>
    %cst_40 = arith.constant dense<0.000000e+00> : vector<8xf32>
    %78 = vector.multi_reduction <add>, %77, %cst_40 [1] : vector<8x256xf32> to vector<8xf32>
    %79 = vector.shape_cast %78 : vector<8xf32> to vector<8x1xf32>
    %cst_41 = arith.constant 2.560000e+02 : f32
    %80 = vector.broadcast %cst_41 : f32 to vector<8x1xf32>
    %81 = arith.divf %79, %80 : vector<8x1xf32>
    %82 = vector.broadcast %81 : vector<8x1xf32> to vector<8x256xf32>
    %83 = arith.subf %77, %82 : vector<8x256xf32>
    %84 = arith.mulf %83, %83 : vector<8x256xf32>
    %cst_42 = arith.constant dense<0.000000e+00> : vector<8xf32>
    %85 = vector.multi_reduction <add>, %84, %cst_42 [1] : vector<8x256xf32> to vector<8xf32>
    %86 = vector.shape_cast %85 : vector<8xf32> to vector<8x1xf32>
    %cst_43 = arith.constant 2.560000e+02 : f32
    %87 = vector.broadcast %cst_43 : f32 to vector<8x1xf32>
    %88 = arith.divf %86, %87 : vector<8x1xf32>
    %cst_44 = arith.constant 9.99999997E-7 : f32
    %89 = vector.broadcast %cst_44 : f32 to vector<8x1xf32>
    %90 = arith.addf %88, %89 : vector<8x1xf32>
    %91 = math.rsqrt %90 : vector<8x1xf32>
    %92 = vector.broadcast %91 : vector<8x1xf32> to vector<8x256xf32>
    %93 = arith.mulf %83, %92 : vector<8x256xf32>
    %c0_45 = arith.constant 0 : index
    %c0_46 = arith.constant 0 : index
    %94 = vector.load %arg12[%c0_45, %c0_46] : memref<1x256xf32, #tpu.memory_space<vmem>>, vector<1x256xf32>
    %95 = vector.broadcast %94 : vector<1x256xf32> to vector<8x256xf32>
    %96 = arith.mulf %93, %95 : vector<8x256xf32>
    %c0_47 = arith.constant 0 : index
    %c0_48 = arith.constant 0 : index
    %97 = vector.load %arg13[%c0_47, %c0_48] : memref<1x256xf32, #tpu.memory_space<vmem>>, vector<1x256xf32>
    %98 = vector.broadcast %97 : vector<1x256xf32> to vector<8x256xf32>
    %99 = arith.addf %96, %98 : vector<8x256xf32>
    %c0_49 = arith.constant 0 : index
    %c0_50 = arith.constant 0 : index
    %c0_51 = arith.constant 0 : index
    %100 = vector.load %arg14[%c0_49, %c0_50, %c0_51] : memref<1x8x256xf32, #tpu.memory_space<vmem>>, vector<1x8x256xf32>
    %101 = vector.shape_cast %100 : vector<1x8x256xf32> to vector<8x256xf32>
    %102 = vector.shape_cast %99 : vector<8x256xf32> to vector<1x8x256xf32>
    tpu.vector_store %arg14[%c0_49, %c0_50, %c0_51], %102 {strides = array<i32>} : memref<1x8x256xf32, #tpu.memory_space<vmem>>, vector<1x8x256xf32>,
    return
  }
  func.func @transform_0(%arg0: i32, %arg1: i32) -> (i32, i32, i32) {
    %c0_i32 = arith.constant 0 : i32
    %c0_i32_0 = arith.constant 0 : i32
    return %arg0, %arg1, %c0_i32 : i32, i32, i32
  }
  func.func @transform_1(%arg0: i32, %arg1: i32) -> (i32, i32, i32) {
    %c0_i32 = arith.constant 0 : i32
    %c0_i32_0 = arith.constant 0 : i32
    %c0_i32_1 = arith.constant 0 : i32
    return %arg0, %c0_i32, %c0_i32_0 : i32, i32, i32
  }
  func.func @transform_2(%arg0: i32, %arg1: i32) -> (i32, i32) {
    %c0_i32 = arith.constant 0 : i32
    %c0_i32_0 = arith.constant 0 : i32
    %c0_i32_1 = arith.constant 0 : i32
    return %c0_i32, %c0_i32_0 : i32, i32
  }
  func.func @transform_3(%arg0: i32, %arg1: i32) -> (i32, i32) {
    %c0_i32 = arith.constant 0 : i32
    %c0_i32_0 = arith.constant 0 : i32
    %c0_i32_1 = arith.constant 0 : i32
    return %c0_i32, %c0_i32_0 : i32, i32
  }
  func.func @transform_4(%arg0: i32, %arg1: i32) -> (i32, i32) {
    %c0_i32 = arith.constant 0 : i32
    %c0_i32_0 = arith.constant 0 : i32
    %c0_i32_1 = arith.constant 0 : i32
    return %c0_i32, %c0_i32_0 : i32, i32
  }
  func.func @transform_5(%arg0: i32, %arg1: i32) -> (i32, i32) {
    %c0_i32 = arith.constant 0 : i32
    %c0_i32_0 = arith.constant 0 : i32
    %c0_i32_1 = arith.constant 0 : i32
    return %c0_i32, %c0_i32_0 : i32, i32
  }
  func.func @transform_6(%arg0: i32, %arg1: i32) -> (i32, i32) {
    %c0_i32 = arith.constant 0 : i32
    %c0_i32_0 = arith.constant 0 : i32
    %c0_i32_1 = arith.constant 0 : i32
    return %c0_i32, %c0_i32_0 : i32, i32
  }
  func.func @transform_7(%arg0: i32, %arg1: i32) -> (i32, i32) {
    %c0_i32 = arith.constant 0 : i32
    %c0_i32_0 = arith.constant 0 : i32
    %c0_i32_1 = arith.constant 0 : i32
    return %c0_i32, %c0_i32_0 : i32, i32
  }
  func.func @transform_8(%arg0: i32, %arg1: i32) -> (i32, i32) {
    %c0_i32 = arith.constant 0 : i32
    %c0_i32_0 = arith.constant 0 : i32
    %c0_i32_1 = arith.constant 0 : i32
    return %c0_i32, %c0_i32_0 : i32, i32
  }
  func.func @transform_9(%arg0: i32, %arg1: i32) -> (i32, i32) {
    %c0_i32 = arith.constant 0 : i32
    %c0_i32_0 = arith.constant 0 : i32
    %c0_i32_1 = arith.constant 0 : i32
    return %c0_i32, %c0_i32_0 : i32, i32
  }
  func.func @transform_10(%arg0: i32, %arg1: i32) -> (i32, i32) {
    %c0_i32 = arith.constant 0 : i32
    %c0_i32_0 = arith.constant 0 : i32
    %c0_i32_1 = arith.constant 0 : i32
    return %c0_i32, %c0_i32_0 : i32, i32
  }
  func.func @transform_11(%arg0: i32, %arg1: i32) -> (i32, i32) {
    %c0_i32 = arith.constant 0 : i32
    %c0_i32_0 = arith.constant 0 : i32
    %c0_i32_1 = arith.constant 0 : i32
    return %c0_i32, %c0_i32_0 : i32, i32
  }
  func.func @transform_12(%arg0: i32, %arg1: i32) -> (i32, i32, i32) {
    %c0_i32 = arith.constant 0 : i32
    %c0_i32_0 = arith.constant 0 : i32
    return %arg0, %arg1, %c0_i32 : i32, i32, i32
  }
}

</mosaic_0001>

<llo_original>
// kernel: tpu_custom_call.1
$region0: #{tpu_custom_call.1}
  #allocation0 [shape = 'u32[]', space=smem, size = 0x4, offset = 0x4, fixed_abs, tag = 'smem constant byte address 0x4 - core index']
  #allocation1 [shape = 'u32[144,128]{1,0:T(1,128)}', space=vmem, size = 0x12000, scoped, tag = 'internal scratch']
  %s0 = inlined_call_operand.hbm [shape: f32[2,8,256], index: 0, kind: input, shape index: {}]
  %s1 = inlined_call_operand.hbm [shape: f32[2,8,256], index: 1, kind: input, shape index: {}]
  %s2 = inlined_call_operand.hbm [shape: bf16[256,256], index: 2, kind: input, shape index: {}]
  %s3 = inlined_call_operand.hbm [shape: f32[1,256], index: 3, kind: input, shape index: {}]
  %s4 = inlined_call_operand.hbm [shape: bf16[256,256], index: 4, kind: input, shape index: {}]
  %s5 = inlined_call_operand.hbm [shape: f32[1,256], index: 5, kind: input, shape index: {}]
  %s6 = inlined_call_operand.hbm [shape: bf16[256,256], index: 6, kind: input, shape index: {}]
  %s7 = inlined_call_operand.hbm [shape: f32[1,256], index: 7, kind: input, shape index: {}]
  %s8 = inlined_call_operand.hbm [shape: bf16[256,256], index: 8, kind: input, shape index: {}]
  %s9 = inlined_call_operand.hbm [shape: f32[1,256], index: 9, kind: input, shape index: {}]
  %s10 = inlined_call_operand.hbm [shape: f32[1,256], index: 10, kind: input, shape index: {}]
  %s11 = inlined_call_operand.hbm [shape: f32[1,256], index: 11, kind: input, shape index: {}]
  %s12 = inlined_call_operand.hbm [shape: f32[2,8,256], index: 12, kind: output, shape index: {}]
  %s13 = sld [smem:[#allocation0]]
  $region129: #{tpu_custom_call.1} parent=0
    _
  %s15 = ssub.s32 1, %s13
  %s16 = scalar_select 0, %s15, %s13
  $region1: #{tpu_custom_call.1} parent=0
    #allocation2 [shape = 'u8[16384]{0}', space=vmem, size = 0x4000, scoped, tag = 'input window, operand 0']
    #allocation3 [shape = 's32[2]{0}', space=sflag, size = 0x8, scoped, tag = 'scoped memory for tpu_custom_call.1']
    #allocation4 [shape = 's32[2]{0}', space=sflag, size = 0x8, scoped, tag = 'scoped memory for tpu_custom_call.1']
    #allocation5 [shape = 'u8[16384]{0}', space=vmem, size = 0x4000, scoped, tag = 'input window, operand 1']
    #allocation6 [shape = 's32[2]{0}', space=sflag, size = 0x8, scoped, tag = 'scoped memory for tpu_custom_call.1']
    #allocation7 [shape = 'u8[131072]{0}', space=vmem, size = 0x20000, scoped, tag = 'input window, operand 2, single buffered']
    #allocation8 [shape = 'u8[1024]{0}', space=vmem, size = 0x400, scoped, tag = 'input window, operand 3, single buffered']
    #allocation9 [shape = 's32[1]{0}', space=sflag, size = 0x4, scoped, tag = 'scoped memory for tpu_custom_call.1']
    #allocation10 [shape = 'u8[131072]{0}', space=vmem, size = 0x20000, scoped, tag = 'input window, operand 4, single buffered']
    #allocation11 [shape = 'u8[1024]{0}', space=vmem, size = 0x400, scoped, tag = 'input window, operand 5, single buffered']
    #allocation12 [shape = 's32[1]{0}', space=sflag, size = 0x4, scoped, tag = 'scoped memory for tpu_custom_call.1']
    #allocation13 [shape = 'u8[131072]{0}', space=vmem, size = 0x20000, scoped, tag = 'input window, operand 6, single buffered']
    #allocation14 [shape = 'u8[1024]{0}', space=vmem, size = 0x400, scoped, tag = 'input window, operand 7, single buffered']
    #allocation15 [shape = 's32[1]{0}', space=sflag, size = 0x4, scoped, tag = 'scoped memory for tpu_custom_call.1']
    #allocation16 [shape = 'u8[131072]{0}', space=vmem, size = 0x20000, scoped, tag = 'input window, operand 8, single buffered']
    #allocation17 [shape = 'u8[1024]{0}', space=vmem, size = 0x400, scoped, tag = 'input window, operand 9, single buffered']
    #allocation18 [shape = 's32[1]{0}', space=sflag, size = 0x4, scoped, tag = 'scoped memory for tpu_custom_call.1']
    #allocation19 [shape = 'u8[1024]{0}', space=vmem, size = 0x400, scoped, tag = 'input window, operand 10, single buffered']
    #allocation20 [shape = 'u8[1024]{0}', space=vmem, size = 0x400, scoped, tag = 'input window, operand 11, single buffered']
    #allocation21 [shape = 's32[1]{0}', space=sflag, size = 0x4, scoped, tag = 'scoped memory for tpu_custom_call.1']
    #allocation22 [shape = 'u8[16384]{0}', space=vmem, size = 0x4000, scoped, tag = 'output window, operand 0']
    %17 = vsyncpa [#allocation3], 0
    %s18 = scalar_lea.sflag [#allocation3], 1
    %19 = vsyncpa %s18, 0
    %20 = vsyncpa [#allocation6], 0
    %s21 = scalar_lea.sflag [#allocation6], 1
    %22 = vsyncpa %s21, 0
    %23 = vsyncpa [#allocation9], 0
    %24 = vsyncpa [#allocation12], 0
    %25 = vsyncpa [#allocation15], 0
    %26 = vsyncpa [#allocation18], 0
    %27 = vsyncpa [#allocation21], 0
    %28 = vsyncpa [#allocation4], 0
    %s29 = scalar_lea.sflag [#allocation4], 1
    %30 = vsyncpa %s29, 0
    loop: start=0, step=1, limit=4
    $region2: #{tpu_custom_call.1} parent=1 // loop_pre_header
      _
    $region3: #{tpu_custom_call.1} parent=1 // loop_header
      %s32 = sphi 0, %s36
      %p33 = scmp.ge.s32.totalorder %s32, 4
      %s39 = sphi 0, %s51
      %s40 = sphi 0, %s47
      %s41 = sphi 0, %s39
      %s42 = sphi 0, %s40
      %s43 = sphi 0, %s41
      %s44 = sphi 0, %s42
      %s56 = sphi 0, %s58
      %s59 = sphi 0, %s56
      %s60 = sphi 0, %s59
      %s76 = sphi 0, %s60
      %s82 = sphi 0, %s84
      %s85 = sphi 0, %s82
      %s86 = sphi 0, %s85
      %s102 = sphi 0, %s86
      %s106 = sphi 0, %s106
      %s108 = sphi 0, %s106
      %s109 = sphi 0, %s108
      %s123 = sphi 0, %s109
      %s127 = sphi 0, %s127
      %s129 = sphi 0, %s127
      %s130 = sphi 0, %s129
      %s144 = sphi 0, %s130
      %s148 = sphi 0, %s148
      %s150 = sphi 0, %s148
      %s151 = sphi 0, %s150
      %s165 = sphi 0, %s151
      %s169 = sphi 0, %s169
      %s171 = sphi 0, %s169
      %s172 = sphi 0, %s171
      %s186 = sphi 0, %s172
      %s190 = sphi 0, %s190
      %s192 = sphi 0, %s190
      %s193 = sphi 0, %s192
      %s207 = sphi 0, %s193
      %s211 = sphi 0, %s211
      %s213 = sphi 0, %s211
      %s214 = sphi 0, %s213
      %s228 = sphi 0, %s214
      %s232 = sphi 0, %s232
      %s234 = sphi 0, %s232
      %s235 = sphi 0, %s234
      %s249 = sphi 0, %s235
      %s253 = sphi 0, %s253
      %s255 = sphi 0, %s253
      %s256 = sphi 0, %s255
      %s270 = sphi 0, %s256
      %s274 = sphi 0, %s274
      %s276 = sphi 0, %s274
      %s277 = sphi 0, %s276
      %s291 = sphi 0, %s277
      %s295 = sphi 0, %s295
      %s297 = sphi 0, %s295
      %s298 = sphi 0, %s297
      %s312 = sphi 0, %s298
      %s320 = sphi 0, %s322
      %s323 = sphi 0, %s320
      %s324 = sphi 0, %s323
      %s340 = sphi 0, %s324
    $region4: #{tpu_custom_call.1} parent=1 // loop_header_branch
      %35 = sbr.rel (%p33) target = $region8
    $region5: #{tpu_custom_call.1} parent=1 // loop_body
      %s37 = ssub.s32 %s32, 1
      %s38 = ssub.s32 %s32, 2
      %s45 = sadd.s32 1, %s40
      %p46 = scmp.ge.s32.totalorder %s45, 1
      %s47 = scalar_select %p46, 0, %s45
      %s48 = sadd.s32 1, %s39
      %s49 = scalar_select %p46, %s48, %s39
      %p50 = scmp.ge.s32.totalorder %s49, 2
      %s51 = scalar_select %p50, 0, %s49
      %s52 = ssub.s32 %s39, %s51
      %s53 = ssub.s32 %s40, %s47
      %s54 = sor.u32 %s52, %s53
      %p55 = scmp.eq.s32.totalorder %s54, 0
      %s57 = sadd.s32 %s56, 1
      %s58 = scalar_select %p55, %s56, %s57
      %p61 = pneg %p55
      %p62 = scmp.eq.s32.totalorder %s32, 1
      %p63 = por %p61, %p62
      %p64 = scmp.ne.s32.totalorder %s56, %s59
      %p65 = scmp.eq.s32.totalorder %s32, 0
      %p66 = por %p64, %p65
      %p67 = scmp.ne.s32.totalorder %s56, %s59
      %p68 = scmp.eq.s32.totalorder %s37, 1
      %p69 = por %p67, %p68
      %p70 = scmp.ne.s32.totalorder %s59, %s60
      %p71 = scmp.eq.s32.totalorder %s37, 0
      %p72 = por %p70, %p71
      %p73 = scmp.ne.s32.totalorder %s59, %s60
      %p74 = scmp.eq.s32.totalorder %s38, 1
      %p75 = por %p73, %p74
      %p77 = scmp.ne.s32.totalorder %s60, %s76
      %p78 = scmp.eq.s32.totalorder %s38, 0
      %p79 = por %p77, %p78
      %s80 = ssub.s32 %s39, %s51
      %p81 = scmp.eq.s32.totalorder %s80, 0
      %s83 = sadd.s32 %s82, 1
      %s84 = scalar_select %p81, %s82, %s83
      %p87 = pneg %p81
      %p88 = scmp.eq.s32.totalorder %s32, 1
      %p89 = por %p87, %p88
      %p90 = scmp.ne.s32.totalorder %s82, %s85
      %p91 = scmp.eq.s32.totalorder %s32, 0
      %p92 = por %p90, %p91
      %p93 = scmp.ne.s32.totalorder %s82, %s85
      %p94 = scmp.eq.s32.totalorder %s37, 1
      %p95 = por %p93, %p94
      %p96 = scmp.ne.s32.totalorder %s85, %s86
      %p97 = scmp.eq.s32.totalorder %s37, 0
      %p98 = por %p96, %p97
      %p99 = scmp.ne.s32.totalorder %s85, %s86
      %p100 = scmp.eq.s32.totalorder %s38, 1
      %p101 = por %p99, %p100
      %p103 = scmp.ne.s32.totalorder %s86, %s102
      %p104 = scmp.eq.s32.totalorder %s38, 0
      %p105 = por %p103, %p104
      %s107 = sadd.s32 %s106, 1
      %p110 = scmp.eq.s32.totalorder %s32, 1
      %p111 = scmp.ne.s32.totalorder %s106, %s108
      %p112 = scmp.eq.s32.totalorder %s32, 0
      %p113 = por %p111, %p112
      %p114 = scmp.ne.s32.totalorder %s106, %s108
      %p115 = scmp.eq.s32.totalorder %s37, 1
      %p116 = por %p114, %p115
      %p117 = scmp.ne.s32.totalorder %s108, %s109
      %p118 = scmp.eq.s32.totalorder %s37, 0
      %p119 = por %p117, %p118
      %p120 = scmp.ne.s32.totalorder %s108, %s109
      %p121 = scmp.eq.s32.totalorder %s38, 1
      %p122 = por %p120, %p121
      %p124 = scmp.ne.s32.totalorder %s109, %s123
      %p125 = scmp.eq.s32.totalorder %s38, 0
      %p126 = por %p124, %p125
      %s128 = sadd.s32 %s127, 1
      %p131 = scmp.eq.s32.totalorder %s32, 1
      %p132 = scmp.ne.s32.totalorder %s127, %s129
      %p133 = scmp.eq.s32.totalorder %s32, 0
      %p134 = por %p132, %p133
      %p135 = scmp.ne.s32.totalorder %s127, %s129
      %p136 = scmp.eq.s32.totalorder %s37, 1
      %p137 = por %p135, %p136
      %p138 = scmp.ne.s32.totalorder %s129, %s130
      %p139 = scmp.eq.s32.totalorder %s37, 0
      %p140 = por %p138, %p139
      %p141 = scmp.ne.s32.totalorder %s129, %s130
      %p142 = scmp.eq.s32.totalorder %s38, 1
      %p143 = por %p141, %p142
      %p145 = scmp.ne.s32.totalorder %s130, %s144
      %p146 = scmp.eq.s32.totalorder %s38, 0
      %p147 = por %p145, %p146
      %s149 = sadd.s32 %s148, 1
      %p152 = scmp.eq.s32.totalorder %s32, 1
      %p153 = scmp.ne.s32.totalorder %s148, %s150
      %p154 = scmp.eq.s32.totalorder %s32, 0
      %p155 = por %p153, %p154
      %p156 = scmp.ne.s32.totalorder %s148, %s150
      %p157 = scmp.eq.s32.totalorder %s37, 1
      %p158 = por %p156, %p157
      %p159 = scmp.ne.s32.totalorder %s150, %s151
      %p160 = scmp.eq.s32.totalorder %s37, 0
      %p161 = por %p159, %p160
      %p162 = scmp.ne.s32.totalorder %s150, %s151
      %p163 = scmp.eq.s32.totalorder %s38, 1
      %p164 = por %p162, %p163
      %p166 = scmp.ne.s32.totalorder %s151, %s165
      %p167 = scmp.eq.s32.totalorder %s38, 0
      %p168 = por %p166, %p167
      %s170 = sadd.s32 %s169, 1
      %p173 = scmp.eq.s32.totalorder %s32, 1
      %p174 = scmp.ne.s32.totalorder %s169, %s171
      %p175 = scmp.eq.s32.totalorder %s32, 0
      %p176 = por %p174, %p175
      %p177 = scmp.ne.s32.totalorder %s169, %s171
      %p178 = scmp.eq.s32.totalorder %s37, 1
      %p179 = por %p177, %p178
      %p180 = scmp.ne.s32.totalorder %s171, %s172
      %p181 = scmp.eq.s32.totalorder %s37, 0
      %p182 = por %p180, %p181
      %p183 = scmp.ne.s32.totalorder %s171, %s172
      %p184 = scmp.eq.s32.totalorder %s38, 1
      %p185 = por %p183, %p184
      %p187 = scmp.ne.s32.totalorder %s172, %s186
      %p188 = scmp.eq.s32.totalorder %s38, 0
      %p189 = por %p187, %p188
      %s191 = sadd.s32 %s190, 1
      %p194 = scmp.eq.s32.totalorder %s32, 1
      %p195 = scmp.ne.s32.totalorder %s190, %s192
      %p196 = scmp.eq.s32.totalorder %s32, 0
      %p197 = por %p195, %p196
      %p198 = scmp.ne.s32.totalorder %s190, %s192
      %p199 = scmp.eq.s32.totalorder %s37, 1
      %p200 = por %p198, %p199
      %p201 = scmp.ne.s32.totalorder %s192, %s193
      %p202 = scmp.eq.s32.totalorder %s37, 0
      %p203 = por %p201, %p202
      %p204 = scmp.ne.s32.totalorder %s192, %s193
      %p205 = scmp.eq.s32.totalorder %s38, 1
      %p206 = por %p204, %p205
      %p208 = scmp.ne.s32.totalorder %s193, %s207
      %p209 = scmp.eq.s32.totalorder %s38, 0
      %p210 = por %p208, %p209
      %s212 = sadd.s32 %s211, 1
      %p215 = scmp.eq.s32.totalorder %s32, 1
      %p216 = scmp.ne.s32.totalorder %s211, %s213
      %p217 = scmp.eq.s32.totalorder %s32, 0
      %p218 = por %p216, %p217
      %p219 = scmp.ne.s32.totalorder %s211, %s213
      %p220 = scmp.eq.s32.totalorder %s37, 1
      %p221 = por %p219, %p220
      %p222 = scmp.ne.s32.totalorder %s213, %s214
      %p223 = scmp.eq.s32.totalorder %s37, 0
      %p224 = por %p222, %p223
      %p225 = scmp.ne.s32.totalorder %s213, %s214
      %p226 = scmp.eq.s32.totalorder %s38, 1
      %p227 = por %p225, %p226
      %p229 = scmp.ne.s32.totalorder %s214, %s228
      %p230 = scmp.eq.s32.totalorder %s38, 0
      %p231 = por %p229, %p230
      %s233 = sadd.s32 %s232, 1
      %p236 = scmp.eq.s32.totalorder %s32, 1
      %p237 = scmp.ne.s32.totalorder %s232, %s234
      %p238 = scmp.eq.s32.totalorder %s32, 0
      %p239 = por %p237, %p238
      %p240 = scmp.ne.s32.totalorder %s232, %s234
      %p241 = scmp.eq.s32.totalorder %s37, 1
      %p242 = por %p240, %p241
      %p243 = scmp.ne.s32.totalorder %s234, %s235
      %p244 = scmp.eq.s32.totalorder %s37, 0
      %p245 = por %p243, %p244
      %p246 = scmp.ne.s32.totalorder %s234, %s235
      %p247 = scmp.eq.s32.totalorder %s38, 1
      %p248 = por %p246, %p247
      %p250 = scmp.ne.s32.totalorder %s235, %s249
      %p251 = scmp.eq.s32.totalorder %s38, 0
      %p252 = por %p250, %p251
      %s254 = sadd.s32 %s253, 1
      %p257 = scmp.eq.s32.totalorder %s32, 1
      %p258 = scmp.ne.s32.totalorder %s253, %s255
      %p259 = scmp.eq.s32.totalorder %s32, 0
      %p260 = por %p258, %p259
      %p261 = scmp.ne.s32.totalorder %s253, %s255
      %p262 = scmp.eq.s32.totalorder %s37, 1
      %p263 = por %p261, %p262
      %p264 = scmp.ne.s32.totalorder %s255, %s256
      %p265 = scmp.eq.s32.totalorder %s37, 0
      %p266 = por %p264, %p265
      %p267 = scmp.ne.s32.totalorder %s255, %s256
      %p268 = scmp.eq.s32.totalorder %s38, 1
      %p269 = por %p267, %p268
      %p271 = scmp.ne.s32.totalorder %s256, %s270
      %p272 = scmp.eq.s32.totalorder %s38, 0
      %p273 = por %p271, %p272
      %s275 = sadd.s32 %s274, 1
      %p278 = scmp.eq.s32.totalorder %s32, 1
      %p279 = scmp.ne.s32.totalorder %s274, %s276
      %p280 = scmp.eq.s32.totalorder %s32, 0
      %p281 = por %p279, %p280
      %p282 = scmp.ne.s32.totalorder %s274, %s276
      %p283 = scmp.eq.s32.totalorder %s37, 1
      %p284 = por %p282, %p283
      %p285 = scmp.ne.s32.totalorder %s276, %s277
      %p286 = scmp.eq.s32.totalorder %s37, 0
      %p287 = por %p285, %p286
      %p288 = scmp.ne.s32.totalorder %s276, %s277
      %p289 = scmp.eq.s32.totalorder %s38, 1
      %p290 = por %p288, %p289
      %p292 = scmp.ne.s32.totalorder %s277, %s291
      %p293 = scmp.eq.s32.totalorder %s38, 0
      %p294 = por %p292, %p293
      %s296 = sadd.s32 %s295, 1
      %p299 = scmp.eq.s32.totalorder %s32, 1
      %p300 = scmp.ne.s32.totalorder %s295, %s297
      %p301 = scmp.eq.s32.totalorder %s32, 0
      %p302 = por %p300, %p301
      %p303 = scmp.ne.s32.totalorder %s295, %s297
      %p304 = scmp.eq.s32.totalorder %s37, 1
      %p305 = por %p303, %p304
      %p306 = scmp.ne.s32.totalorder %s297, %s298
      %p307 = scmp.eq.s32.totalorder %s37, 0
      %p308 = por %p306, %p307
      %p309 = scmp.ne.s32.totalorder %s297, %s298
      %p310 = scmp.eq.s32.totalorder %s38, 1
      %p311 = por %p309, %p310
      %p313 = scmp.ne.s32.totalorder %s298, %s312
      %p314 = scmp.eq.s32.totalorder %s38, 0
      %p315 = por %p313, %p314
      %s316 = ssub.s32 %s39, %s51
      %s317 = ssub.s32 %s40, %s47
      %s318 = sor.u32 %s316, %s317
      %p319 = scmp.eq.s32.totalorder %s318, 0
      %s321 = sadd.s32 %s320, 1
      %s322 = scalar_select %p319, %s320, %s321
      %p325 = pneg %p319
      %p326 = scmp.eq.s32.totalorder %s32, 1
      %p327 = por %p325, %p326
      %p328 = scmp.ne.s32.totalorder %s320, %s323
      %p329 = scmp.eq.s32.totalorder %s32, 0
      %p330 = por %p328, %p329
      %p331 = scmp.ne.s32.totalorder %s320, %s323
      %p332 = scmp.eq.s32.totalorder %s37, 1
      %p333 = por %p331, %p332
      %p334 = scmp.ne.s32.totalorder %s323, %s324
      %p335 = scmp.eq.s32.totalorder %s37, 0
      %p336 = por %p334, %p335
      %p337 = scmp.ne.s32.totalorder %s323, %s324
      %p338 = scmp.eq.s32.totalorder %s38, 1
      %p339 = por %p337, %p338
      %p341 = scmp.ne.s32.totalorder %s324, %s340
      %p342 = scmp.eq.s32.totalorder %s38, 0
      %p343 = por %p341, %p342
      %p344 = scmp.le.s32.totalorder 1, %s32
      %p345 = scmp.lt.s32.totalorder %s32, 3
      %p346 = pnand %p344, %p345
      %p347 = pneg %p346
      // Predicated region
      $region9: #{tpu_custom_call.1} parent=5 // pred_check
        _
      $region10: #{tpu_custom_call.1} parent=5 // pred_check_branch
        %349 = sbr.rel (%p346) target = $region12
      $region11: #{tpu_custom_call.1} parent=5 // pred_region
        %s350 = ssub.s32 %s32, 1
        // Predicated region
        $region13: #{tpu_custom_call.1} parent=11 // pred_check
          %p351 = pneg %p119
        $region14: #{tpu_custom_call.1} parent=11 // pred_check_branch
          %353 = sbr.rel (%p351) target = $region16
        $region15: #{tpu_custom_call.1} parent=11 // pred_region
          %s355 = ssub.s32 4096, 4096
          %356 = vsyncadd [#allocation6], %s355
          %s357 = sshll.u32 [#allocation7], 4
          %s358 = int_to_ptr.vmem [resolvable:$true] %s357
          %363 = dma.hbm_to_vmem [thread:$0]  %s2, 4096, %s358, [#allocation6], 128, 128, 8
        $region16: #{tpu_custom_call.1} parent=11 // pred_fallthru
          _
        // Predicated region
        $region17: #{tpu_custom_call.1} parent=11 // pred_check
          %p364 = pneg %p140
        $region18: #{tpu_custom_call.1} parent=11 // pred_check_branch
          %366 = sbr.rel (%p364) target = $region20
        $region19: #{tpu_custom_call.1} parent=11 // pred_region
          %s368 = ssub.s32 32, 32
          %369 = vsyncadd [#allocation9], %s368
          %s371 = sshll.u32 [#allocation8], 4
          %s372 = int_to_ptr.vmem [resolvable:$true] %s371
          %374 = dma.hbm_to_vmem [thread:$0]  %s3, 32, %s372, [#allocation9]
        $region20: #{tpu_custom_call.1} parent=11 // pred_fallthru
          _
        // Predicated region
        $region21: #{tpu_custom_call.1} parent=11 // pred_check
          %p375 = pneg %p161
        $region22: #{tpu_custom_call.1} parent=11 // pred_check_branch
          %377 = sbr.rel (%p375) target = $region24
        $region23: #{tpu_custom_call.1} parent=11 // pred_region
          %s379 = ssub.s32 4096, 4096
          %380 = vsyncadd [#allocation9], %s379
          %s381 = sshll.u32 [#allocation10], 4
          %s382 = int_to_ptr.vmem [resolvable:$true] %s381
          %387 = dma.hbm_to_vmem [thread:$0]  %s4, 4096, %s382, [#allocation9], 128, 128, 8
        $region24: #{tpu_custom_call.1} parent=11 // pred_fallthru
          _
        // Predicated region
        $region25: #{tpu_custom_call.1} parent=11 // pred_check
          %p388 = pneg %p182
        $region26: #{tpu_custom_call.1} parent=11 // pred_check_branch
          %390 = sbr.rel (%p388) target = $region28
        $region27: #{tpu_custom_call.1} parent=11 // pred_region
          %s392 = ssub.s32 32, 32
          %393 = vsyncadd [#allocation12], %s392
          %s395 = sshll.u32 [#allocation11], 4
          %s396 = int_to_ptr.vmem [resolvable:$true] %s395
          %398 = dma.hbm_to_vmem [thread:$0]  %s5, 32, %s396, [#allocation12]
        $region28: #{tpu_custom_call.1} parent=11 // pred_fallthru
          _
        // Predicated region
        $region29: #{tpu_custom_call.1} parent=11 // pred_check
          %p399 = pneg %p203
        $region30: #{tpu_custom_call.1} parent=11 // pred_check_branch
          %401 = sbr.rel (%p399) target = $region32
        $region31: #{tpu_custom_call.1} parent=11 // pred_region
          %s403 = ssub.s32 4096, 4096
          %404 = vsyncadd [#allocation12], %s403
          %s405 = sshll.u32 [#allocation13], 4
          %s406 = int_to_ptr.vmem [resolvable:$true] %s405
          %411 = dma.hbm_to_vmem [thread:$0]  %s6, 4096, %s406, [#allocation12], 128, 128, 8
        $region32: #{tpu_custom_call.1} parent=11 // pred_fallthru
          _
        // Predicated region
        $region33: #{tpu_custom_call.1} parent=11 // pred_check
          %p412 = pneg %p224
        $region34: #{tpu_custom_call.1} parent=11 // pred_check_branch
          %414 = sbr.rel (%p412) target = $region36
        $region35: #{tpu_custom_call.1} parent=11 // pred_region
          %s416 = ssub.s32 32, 32
          %417 = vsyncadd [#allocation15], %s416
          %s419 = sshll.u32 [#allocation14], 4
          %s420 = int_to_ptr.vmem [resolvable:$true] %s419
          %422 = dma.hbm_to_vmem [thread:$0]  %s7, 32, %s420, [#allocation15]
        $region36: #{tpu_custom_call.1} parent=11 // pred_fallthru
          _
        // Predicated region
        $region37: #{tpu_custom_call.1} parent=11 // pred_check
          %p423 = pneg %p245
        $region38: #{tpu_custom_call.1} parent=11 // pred_check_branch
          %425 = sbr.rel (%p423) target = $region40
        $region39: #{tpu_custom_call.1} parent=11 // pred_region
          %s427 = ssub.s32 4096, 4096
          %428 = vsyncadd [#allocation15], %s427
          %s429 = sshll.u32 [#allocation16], 4
          %s430 = int_to_ptr.vmem [resolvable:$true] %s429
          %435 = dma.hbm_to_vmem [thread:$0]  %s8, 4096, %s430, [#allocation15], 128, 128, 8
        $region40: #{tpu_custom_call.1} parent=11 // pred_fallthru
          _
        // Predicated region
        $region41: #{tpu_custom_call.1} parent=11 // pred_check
          %p436 = pneg %p266
        $region42: #{tpu_custom_call.1} parent=11 // pred_check_branch
          %438 = sbr.rel (%p436) target = $region44
        $region43: #{tpu_custom_call.1} parent=11 // pred_region
          %s440 = ssub.s32 32, 32
          %441 = vsyncadd [#allocation18], %s440
          %s443 = sshll.u32 [#allocation17], 4
          %s444 = int_to_ptr.vmem [resolvable:$true] %s443
          %446 = dma.hbm_to_vmem [thread:$0]  %s9, 32, %s444, [#allocation18]
        $region44: #{tpu_custom_call.1} parent=11 // pred_fallthru
          _
        // Predicated region
        $region45: #{tpu_custom_call.1} parent=11 // pred_check
          %p447 = pneg %p287
        $region46: #{tpu_custom_call.1} parent=11 // pred_check_branch
          %449 = sbr.rel (%p447) target = $region48
        $region47: #{tpu_custom_call.1} parent=11 // pred_region
          %s451 = ssub.s32 32, 32
          %452 = vsyncadd [#allocation18], %s451
          %s454 = sshll.u32 [#allocation19], 4
          %s455 = int_to_ptr.vmem [resolvable:$true] %s454
          %457 = dma.hbm_to_vmem [thread:$0]  %s10, 32, %s455, [#allocation18]
        $region48: #{tpu_custom_call.1} parent=11 // pred_fallthru
          _
        // Predicated region
        $region49: #{tpu_custom_call.1} parent=11 // pred_check
          %p458 = pneg %p308
        $region50: #{tpu_custom_call.1} parent=11 // pred_check_branch
          %460 = sbr.rel (%p458) target = $region52
        $region51: #{tpu_custom_call.1} parent=11 // pred_region
          %s462 = ssub.s32 32, 32
          %463 = vsyncadd [#allocation21], %s462
          %s465 = sshll.u32 [#allocation20], 4
          %s466 = int_to_ptr.vmem [resolvable:$true] %s465
          %468 = dma.hbm_to_vmem [thread:$0]  %s11, 32, %s466, [#allocation21]
        $region52: #{tpu_custom_call.1} parent=11 // pred_fallthru
          _
      $region12: #{tpu_custom_call.1} parent=5 // pred_fallthru
        _
      %p469 = scmp.lt.s32.totalorder %s32, 2
      // Predicated region
      $region53: #{tpu_custom_call.1} parent=5 // pred_check
        %p470 = pneg %p469
      $region54: #{tpu_custom_call.1} parent=5 // pred_check_branch
        %472 = sbr.rel (%p470) target = $region56
      $region55: #{tpu_custom_call.1} parent=5 // pred_region
        // Predicated region
        $region57: #{tpu_custom_call.1} parent=55 // pred_check
          %p473 = pneg %p66
        $region58: #{tpu_custom_call.1} parent=55 // pred_check_branch
          %475 = sbr.rel (%p473) target = $region60
        $region59: #{tpu_custom_call.1} parent=55 // pred_region
          %s476 = sand.u32 %s56, 1
          %s477 = scalar_lea.sflag [#allocation3], %s476
          %s478 = sand.u32 %s56, 1
          %s479 = smul.addr %s478, 16
          %s480 = scalar_lea.vmem [#allocation2], %s479
          %s482 = ssub.s32 256, 256
          %483 = vsyncadd %s477, %s482
          %s484 = smul.addr %s40, 2
          %s485 = smul.addr %s39, 2
          %s486 = sadd.s32 %s484, %s485
          %s487 = smul.addr %s486, 128
          %s488 = scalar_lea.hbm %s0, %s487
          %s490 = sshll.u32 %s480, 4
          %s491 = int_to_ptr.vmem [resolvable:$true] %s490
          %493 = dma.hbm_to_vmem [thread:$0]  %s488, 256, %s491, %s477
        $region60: #{tpu_custom_call.1} parent=55 // pred_fallthru
          _
        // Predicated region
        $region61: #{tpu_custom_call.1} parent=55 // pred_check
          %p494 = pneg %p92
        $region62: #{tpu_custom_call.1} parent=55 // pred_check_branch
          %496 = sbr.rel (%p494) target = $region64
        $region63: #{tpu_custom_call.1} parent=55 // pred_region
          %s497 = sand.u32 %s32, 1
          %s498 = scalar_lea.sflag [#allocation6], %s497
          %s499 = sand.u32 %s82, 1
          %s500 = smul.addr %s499, 16
          %s501 = scalar_lea.vmem [#allocation5], %s500
          %s503 = ssub.s32 256, 256
          %504 = vsyncadd %s498, %s503
          %s505 = smul.addr %s39, 2
          %s506 = smul.addr %s505, 128
          %s507 = scalar_lea.hbm %s1, %s506
          %s509 = sshll.u32 %s501, 4
          %s510 = int_to_ptr.vmem [resolvable:$true] %s509
          %512 = dma.hbm_to_vmem [thread:$0]  %s507, 256, %s510, %s498
        $region64: #{tpu_custom_call.1} parent=55 // pred_fallthru
          _
      $region56: #{tpu_custom_call.1} parent=5 // pred_fallthru
        _
      %p513 = scmp.le.s32.totalorder 1, %s32
      %p514 = scmp.lt.s32.totalorder %s32, 3
      %p515 = pnand %p513, %p514
      %p516 = pneg %p515
      // Predicated region
      $region65: #{tpu_custom_call.1} parent=5 // pred_check
        _
      $region66: #{tpu_custom_call.1} parent=5 // pred_check_branch
        %518 = sbr.rel (%p515) target = $region68
      $region67: #{tpu_custom_call.1} parent=5 // pred_region
        %s519 = ssub.s32 %s32, 1
        %s520 = sand.u32 %s59, 1
        %s521 = scalar_lea.sflag [#allocation3], %s520
        %s522 = sand.u32 %s59, 1
        %s523 = smul.addr %s522, 16
        %s524 = scalar_lea.vmem [#allocation2], %s523
        // Predicated region
        $region69: #{tpu_custom_call.1} parent=67 // pred_check
          %p525 = pneg %p72
        $region70: #{tpu_custom_call.1} parent=67 // pred_check_branch
          %527 = sbr.rel (%p525) target = $region72
        $region71: #{tpu_custom_call.1} parent=67 // pred_region
          %528 = dma.done %s521, 256
        $region72: #{tpu_custom_call.1} parent=67 // pred_fallthru
          _
        %s529 = sand.u32 %s37, 1
        %s530 = scalar_lea.sflag [#allocation6], %s529
        %s531 = sand.u32 %s85, 1
        %s532 = smul.addr %s531, 16
        %s533 = scalar_lea.vmem [#allocation5], %s532
        // Predicated region
        $region73: #{tpu_custom_call.1} parent=67 // pred_check
          %p534 = pneg %p98
        $region74: #{tpu_custom_call.1} parent=67 // pred_check_branch
          %536 = sbr.rel (%p534) target = $region76
        $region75: #{tpu_custom_call.1} parent=67 // pred_region
          %537 = dma.done %s530, 256
        $region76: #{tpu_custom_call.1} parent=67 // pred_fallthru
          _
        // Predicated region
        $region77: #{tpu_custom_call.1} parent=67 // pred_check
          %p538 = pneg %p119
        $region78: #{tpu_custom_call.1} parent=67 // pred_check_branch
          %540 = sbr.rel (%p538) target = $region80
        $region79: #{tpu_custom_call.1} parent=67 // pred_region
          %541 = dma.done [#allocation6], 4096
        $region80: #{tpu_custom_call.1} parent=67 // pred_fallthru
          _
        // Predicated region
        $region81: #{tpu_custom_call.1} parent=67 // pred_check
          %p542 = pneg %p140
        $region82: #{tpu_custom_call.1} parent=67 // pred_check_branch
          %544 = sbr.rel (%p542) target = $region84
        $region83: #{tpu_custom_call.1} parent=67 // pred_region
          %545 = dma.done [#allocation9], 32
        $region84: #{tpu_custom_call.1} parent=67 // pred_fallthru
          _
        // Predicated region
        $region85: #{tpu_custom_call.1} parent=67 // pred_check
          %p546 = pneg %p161
        $region86: #{tpu_custom_call.1} parent=67 // pred_check_branch
          %548 = sbr.rel (%p546) target = $region88
        $region87: #{tpu_custom_call.1} parent=67 // pred_region
          %549 = dma.done [#allocation9], 4096
        $region88: #{tpu_custom_call.1} parent=67 // pred_fallthru
          _
        // Predicated region
        $region89: #{tpu_custom_call.1} parent=67 // pred_check
          %p550 = pneg %p182
        $region90: #{tpu_custom_call.1} parent=67 // pred_check_branch
          %552 = sbr.rel (%p550) target = $region92
        $region91: #{tpu_custom_call.1} parent=67 // pred_region
          %553 = dma.done [#allocation12], 32
        $region92: #{tpu_custom_call.1} parent=67 // pred_fallthru
          _
        // Predicated region
        $region93: #{tpu_custom_call.1} parent=67 // pred_check
          %p554 = pneg %p203
        $region94: #{tpu_custom_call.1} parent=67 // pred_check_branch
          %556 = sbr.rel (%p554) target = $region96
        $region95: #{tpu_custom_call.1} parent=67 // pred_region
          %557 = dma.done [#allocation12], 4096
        $region96: #{tpu_custom_call.1} parent=67 // pred_fallthru
          _
        // Predicated region
        $region97: #{tpu_custom_call.1} parent=67 // pred_check
          %p558 = pneg %p224
        $region98: #{tpu_custom_call.1} parent=67 // pred_check_branch
          %560 = sbr.rel (%p558) target = $region100
        $region99: #{tpu_custom_call.1} parent=67 // pred_region
          %561 = dma.done [#allocation15], 32
        $region100: #{tpu_custom_call.1} parent=67 // pred_fallthru
          _
        // Predicated region
        $region101: #{tpu_custom_call.1} parent=67 // pred_check
          %p562 = pneg %p245
        $region102: #{tpu_custom_call.1} parent=67 // pred_check_branch
          %564 = sbr.rel (%p562) target = $region104
        $region103: #{tpu_custom_call.1} parent=67 // pred_region
          %565 = dma.done [#allocation15], 4096
        $region104: #{tpu_custom_call.1} parent=67 // pred_fallthru
          _
        // Predicated region
        $region105: #{tpu_custom_call.1} parent=67 // pred_check
          %p566 = pneg %p266
        $region106: #{tpu_custom_call.1} parent=67 // pred_check_branch
          %568 = sbr.rel (%p566) target = $region108
        $region107: #{tpu_custom_call.1} parent=67 // pred_region
          %569 = dma.done [#allocation18], 32
        $region108: #{tpu_custom_call.1} parent=67 // pred_fallthru
          _
        // Predicated region
        $region109: #{tpu_custom_call.1} parent=67 // pred_check
          %p570 = pneg %p287
        $region110: #{tpu_custom_call.1} parent=67 // pred_check_branch
          %572 = sbr.rel (%p570) target = $region112
        $region111: #{tpu_custom_call.1} parent=67 // pred_region
          %573 = dma.done [#allocation18], 32
        $region112: #{tpu_custom_call.1} parent=67 // pred_fallthru
          _
        // Predicated region
        $region113: #{tpu_custom_call.1} parent=67 // pred_check
          %p574 = pneg %p308
        $region114: #{tpu_custom_call.1} parent=67 // pred_check_branch
          %576 = sbr.rel (%p574) target = $region116
        $region115: #{tpu_custom_call.1} parent=67 // pred_region
          %577 = dma.done [#allocation21], 32
        $region116: #{tpu_custom_call.1} parent=67 // pred_fallthru
          _
        %s578 = sand.u32 %s59, 1
        %s579 = scalar_lea.sflag [#allocation3], %s578
        %s580 = sand.u32 %s59, 1
        %s581 = smul.addr %s580, 16
        %s582 = scalar_lea.vmem [#allocation2], %s581
        %p583 = pneg %p72
        %p584 = pneg %p69
        %s585 = sand.u32 %s37, 1
        %s586 = scalar_lea.sflag [#allocation6], %s585
        %s587 = sand.u32 %s85, 1
        %s588 = smul.addr %s587, 16
        %s589 = scalar_lea.vmem [#allocation5], %s588
        %p590 = pneg %p98
        %p591 = pneg %p95
        %p592 = pneg %p119
        %p593 = pneg %p116
        %p594 = pneg %p140
        %p595 = pneg %p137
        %p596 = pneg %p161
        %p597 = pneg %p158
        %p598 = pneg %p182
        %p599 = pneg %p179
        %p600 = pneg %p203
        %p601 = pneg %p200
        %p602 = pneg %p224
        %p603 = pneg %p221
        %p604 = pneg %p245
        %p605 = pneg %p242
        %p606 = pneg %p266
        %p607 = pneg %p263
        %p608 = pneg %p287
        %p609 = pneg %p284
        %p610 = pneg %p308
        %p611 = pneg %p305
        %p612 = pneg %p336
        %p613 = pneg %p333
        %s614 = sand.u32 %s323, 1
        %s615 = scalar_lea.sflag [#allocation4], %s614
        %s616 = sand.u32 %s323, 1
        %s617 = smul.addr %s616, 16
        %s618 = scalar_lea.vmem [#allocation22], %s617
        %v620 = vld [vmem:[%s524] sm:$0xff]
        %v621 = vld [vmem:[%s524 + $0x8] sm:$0xff]
        %v622 = vpack.c.bf16 %v620, %v620
        %v623 = vpack.c.bf16 %v621, %v621
        %v624 = vld [vmem:[%s533] sm:$0xff]
        %v625 = vld [vmem:[%s533 + $0x8] sm:$0xff]
        %v626 = vpack.c.bf16 %v624, %v624
        %v627 = vpack.c.bf16 %v625, %v625
        %v628 = vld [vmem:[#allocation7] sm:$0xff]
        %v629 = vld [vmem:[#allocation7 + $0x8] sm:$0xff]
        %v630 = vld [vmem:[#allocation7 + $0x10] sm:$0xff]
        %v631 = vld [vmem:[#allocation7 + $0x18] sm:$0xff]
        %v632 = vld [vmem:[#allocation7 + $0x20] sm:$0xff]
        %v633 = vld [vmem:[#allocation7 + $0x28] sm:$0xff]
        %v634 = vld [vmem:[#allocation7 + $0x30] sm:$0xff]
        %v635 = vld [vmem:[#allocation7 + $0x38] sm:$0xff]
        %v636 = vld [vmem:[#allocation7 + $0x40] sm:$0xff]
        %v637 = vld [vmem:[#allocation7 + $0x48] sm:$0xff]
        %v638 = vld [vmem:[#allocation7 + $0x50] sm:$0xff]
        %v639 = vld [vmem:[#allocation7 + $0x58] sm:$0xff]
        %v640 = vld [vmem:[#allocation7 + $0x60] sm:$0xff]
        %v641 = vld [vmem:[#allocation7 + $0x68] sm:$0xff]
        %v642 = vld [vmem:[#allocation7 + $0x70] sm:$0xff]
        %v643 = vld [vmem:[#allocation7 + $0x78] sm:$0xff]
        %v644 = vld [vmem:[#allocation7 + $0x80] sm:$0xff]
        %v645 = vld [vmem:[#allocation7 + $0x88] sm:$0xff]
        %v646 = vld [vmem:[#allocation7 + $0x90] sm:$0xff]
        %v647 = vld [vmem:[#allocation7 + $0x98] sm:$0xff]
        %v648 = vld [vmem:[#allocation7 + $0xa0] sm:$0xff]
        %v649 = vld [vmem:[#allocation7 + $0xa8] sm:$0xff]
        %v650 = vld [vmem:[#allocation7 + $0xb0] sm:$0xff]
        %v651 = vld [vmem:[#allocation7 + $0xb8] sm:$0xff]
        %v652 = vld [vmem:[#allocation7 + $0xc0] sm:$0xff]
        %v653 = vld [vmem:[#allocation7 + $0xc8] sm:$0xff]
        %v654 = vld [vmem:[#allocation7 + $0xd0] sm:$0xff]
        %v655 = vld [vmem:[#allocation7 + $0xd8] sm:$0xff]
        %v656 = vld [vmem:[#allocation7 + $0xe0] sm:$0xff]
        %v657 = vld [vmem:[#allocation7 + $0xe8] sm:$0xff]
        %v658 = vld [vmem:[#allocation7 + $0xf0] sm:$0xff]
        %v659 = vld [vmem:[#allocation7 + $0xf8] sm:$0xff]
        %v660 = vld [vmem:[#allocation8] sm:$0x3]
        %v662 = vlaneseq
        %v663 = vshrl.u32 %v662, 7
        %v664 = vsub.s32 0, %v663
        %v665 = vrot.slane %v660, %v664
        %v666 = vlaneseq
        %v667 = vshrl.u32 %v666, 7
        %v668 = vsub.s32 1, %v667
        %v669 = vrot.slane %v660, %v668
        %v704 = vunpack.c.l.b16 %v628
        %v705 = vunpack.c.h.b16 %v628
        %v706 = vunpack.c.l.b16 %v629
        %v707 = vunpack.c.h.b16 %v629
        %v708 = vunpack.c.l.b16 %v630
        %v709 = vunpack.c.h.b16 %v630
        %v710 = vunpack.c.l.b16 %v631
        %v711 = vunpack.c.h.b16 %v631
        %v712 = vunpack.c.l.b16 %v632
        %v713 = vunpack.c.h.b16 %v632
        %v714 = vunpack.c.l.b16 %v633
        %v715 = vunpack.c.h.b16 %v633
        %v716 = vunpack.c.l.b16 %v634
        %v717 = vunpack.c.h.b16 %v634
        %v718 = vunpack.c.l.b16 %v635
        %v719 = vunpack.c.h.b16 %v635
        %v720 = vunpack.c.l.b16 %v636
        %v721 = vunpack.c.h.b16 %v636
        %v722 = vunpack.c.l.b16 %v637
        %v723 = vunpack.c.h.b16 %v637
        %v724 = vunpack.c.l.b16 %v638
        %v725 = vunpack.c.h.b16 %v638
        %v726 = vunpack.c.l.b16 %v639
        %v727 = vunpack.c.h.b16 %v639
        %v728 = vunpack.c.l.b16 %v640
        %v729 = vunpack.c.h.b16 %v640
        %v730 = vunpack.c.l.b16 %v641
        %v731 = vunpack.c.h.b16 %v641
        %v732 = vunpack.c.l.b16 %v642
        %v733 = vunpack.c.h.b16 %v642
        %v734 = vunpack.c.l.b16 %v643
        %v735 = vunpack.c.h.b16 %v643
        %v736 = vunpack.c.l.b16 %v644
        %v737 = vunpack.c.h.b16 %v644
        %v738 = vunpack.c.l.b16 %v645
        %v739 = vunpack.c.h.b16 %v645
        %v740 = vunpack.c.l.b16 %v646
        %v741 = vunpack.c.h.b16 %v646
        %v742 = vunpack.c.l.b16 %v647
        %v743 = vunpack.c.h.b16 %v647
        %v744 = vunpack.c.l.b16 %v648
        %v745 = vunpack.c.h.b16 %v648
        %v746 = vunpack.c.l.b16 %v649
        %v747 = vunpack.c.h.b16 %v649
        %v748 = vunpack.c.l.b16 %v650
        %v749 = vunpack.c.h.b16 %v650
        %v750 = vunpack.c.l.b16 %v651
        %v751 = vunpack.c.h.b16 %v651
        %v752 = vunpack.c.l.b16 %v652
        %v753 = vunpack.c.h.b16 %v652
        %v754 = vunpack.c.l.b16 %v653
        %v755 = vunpack.c.h.b16 %v653
        %v756 = vunpack.c.l.b16 %v654
        %v757 = vunpack.c.h.b16 %v654
        %v758 = vunpack.c.l.b16 %v655
        %v759 = vunpack.c.h.b16 %v655
        %v760 = vunpack.c.l.b16 %v656
        %v761 = vunpack.c.h.b16 %v656
        %v762 = vunpack.c.l.b16 %v657
        %v763 = vunpack.c.h.b16 %v657
        %v764 = vunpack.c.l.b16 %v658
        %v765 = vunpack.c.h.b16 %v658
        %v766 = vunpack.c.l.b16 %v659
        %v767 = vunpack.c.h.b16 %v659
        %v768 = vpack.c.b16 %v706, %v704
        %v769 = vpack.c.b16 %v707, %v705
        %v770 = vpack.c.b16 %v710, %v708
        %v771 = vpack.c.b16 %v711, %v709
        %v772 = vpack.c.b16 %v714, %v712
        %v773 = vpack.c.b16 %v715, %v713
        %v774 = vpack.c.b16 %v718, %v716
        %v775 = vpack.c.b16 %v719, %v717
        %v776 = vpack.c.b16 %v722, %v720
        %v777 = vpack.c.b16 %v723, %v721
        %v778 = vpack.c.b16 %v726, %v724
        %v779 = vpack.c.b16 %v727, %v725
        %v780 = vpack.c.b16 %v730, %v728
        %v781 = vpack.c.b16 %v731, %v729
        %v782 = vpack.c.b16 %v734, %v732
        %v783 = vpack.c.b16 %v735, %v733
        %v784 = vpack.c.b16 %v738, %v736
        %v785 = vpack.c.b16 %v739, %v737
        %v786 = vpack.c.b16 %v742, %v740
        %v787 = vpack.c.b16 %v743, %v741
        %v788 = vpack.c.b16 %v746, %v744
        %v789 = vpack.c.b16 %v747, %v745
        %v790 = vpack.c.b16 %v750, %v748
        %v791 = vpack.c.b16 %v751, %v749
        %v792 = vpack.c.b16 %v754, %v752
        %v793 = vpack.c.b16 %v755, %v753
        %v794 = vpack.c.b16 %v758, %v756
        %v795 = vpack.c.b16 %v759, %v757
        %v796 = vpack.c.b16 %v762, %v760
        %v797 = vpack.c.b16 %v763, %v761
        %v798 = vpack.c.b16 %v766, %v764
        %v799 = vpack.c.b16 %v767, %v765
        %832 = vmatprep.subr.bf16.mxu0 %v769
        %833 = vmatpush1.bf16.msra.mxu0 %v768
        %834 = vmatprep.subr.bf16.mxu0 %v771
        %835 = vmatpush1.bf16.msra.mxu0 %v770
        %836 = vmatprep.subr.bf16.mxu0 %v773
        %837 = vmatpush1.bf16.msra.mxu0 %v772
        %838 = vmatprep.subr.bf16.mxu0 %v775
        %839 = vmatpush1.bf16.msra.mxu0 %v774
        %840 = vmatprep.subr.bf16.mxu0 %v777
        %841 = vmatpush1.bf16.msra.mxu0 %v776
        %842 = vmatprep.subr.bf16.mxu0 %v779
        %843 = vmatpush1.bf16.msra.mxu0 %v778
        %844 = vmatprep.subr.bf16.mxu0 %v781
        %845 = vmatpush1.bf16.msra.mxu0 %v780
        %846 = vmatprep.subr.bf16.mxu0 %v783
        %847 = vmatpush1.bf16.msra.mxu0 %v782
        %848 = vmatprep.subr.bf16.mxu0 %v785
        %849 = vmatpush1.bf16.msra.mxu0 %v784
        %850 = vmatprep.subr.bf16.mxu0 %v787
        %851 = vmatpush1.bf16.msra.mxu0 %v786
        %852 = vmatprep.subr.bf16.mxu0 %v789
        %853 = vmatpush1.bf16.msra.mxu0 %v788
        %854 = vmatprep.subr.bf16.mxu0 %v791
        %855 = vmatpush1.bf16.msra.mxu0 %v790
        %856 = vmatprep.subr.bf16.mxu0 %v793
        %857 = vmatpush1.bf16.msra.mxu0 %v792
        %858 = vmatprep.subr.bf16.mxu0 %v795
        %859 = vmatpush1.bf16.msra.mxu0 %v794
        %860 = vmatprep.subr.bf16.mxu0 %v797
        %861 = vmatpush1.bf16.msra.mxu0 %v796
        %862 = vmatprep.subr.bf16.mxu0 %v799
        %863 = vmatpush1.bf16.msra.mxu0 %v798
        %864 = vmatprep.mubr.bf16.mxu0 %v623
        %865 = vmatmul.mubr.bf16.gmra.mrb[0].mxu0 %v622
        %v866 = vpop.f32.mrb[0].mxu0
        %v867 = vadd.f32 %v665, %v866
        %v868 = vpop.f32.mrb[0].mxu0
        %v869 = vadd.f32 %v669, %v868
        %v870 = vpop.f32.mrb[0].mxu0
        %v871 = vpop.f32.mrb[0].mxu0
        %872 = vdwg.mxu0
        %v873 = vld [vmem:[#allocation10] sm:$0xff]
        %v874 = vld [vmem:[#allocation10 + $0x8] sm:$0xff]
        %v875 = vld [vmem:[#allocation10 + $0x10] sm:$0xff]
        %v876 = vld [vmem:[#allocation10 + $0x18] sm:$0xff]
        %v877 = vld [vmem:[#allocation10 + $0x20] sm:$0xff]
        %v878 = vld [vmem:[#allocation10 + $0x28] sm:$0xff]
        %v879 = vld [vmem:[#allocation10 + $0x30] sm:$0xff]
        %v880 = vld [vmem:[#allocation10 + $0x38] sm:$0xff]
        %v881 = vld [vmem:[#allocation10 + $0x40] sm:$0xff]
        %v882 = vld [vmem:[#allocation10 + $0x48] sm:$0xff]
        %v883 = vld [vmem:[#allocation10 + $0x50] sm:$0xff]
        %v884 = vld [vmem:[#allocation10 + $0x58] sm:$0xff]
        %v885 = vld [vmem:[#allocation10 + $0x60] sm:$0xff]
        %v886 = vld [vmem:[#allocation10 + $0x68] sm:$0xff]
        %v887 = vld [vmem:[#allocation10 + $0x70] sm:$0xff]
        %v888 = vld [vmem:[#allocation10 + $0x78] sm:$0xff]
        %v889 = vld [vmem:[#allocation10 + $0x80] sm:$0xff]
        %v890 = vld [vmem:[#allocation10 + $0x88] sm:$0xff]
        %v891 = vld [vmem:[#allocation10 + $0x90] sm:$0xff]
        %v892 = vld [vmem:[#allocation10 + $0x98] sm:$0xff]
        %v893 = vld [vmem:[#allocation10 + $0xa0] sm:$0xff]
        %v894 = vld [vmem:[#allocation10 + $0xa8] sm:$0xff]
        %v895 = vld [vmem:[#allocation10 + $0xb0] sm:$0xff]
        %v896 = vld [vmem:[#allocation10 + $0xb8] sm:$0xff]
        %v897 = vld [vmem:[#allocation10 + $0xc0] sm:$0xff]
        %v898 = vld [vmem:[#allocation10 + $0xc8] sm:$0xff]
        %v899 = vld [vmem:[#allocation10 + $0xd0] sm:$0xff]
        %v900 = vld [vmem:[#allocation10 + $0xd8] sm:$0xff]
        %v901 = vld [vmem:[#allocation10 + $0xe0] sm:$0xff]
        %v902 = vld [vmem:[#allocation10 + $0xe8] sm:$0xff]
        %v903 = vld [vmem:[#allocation10 + $0xf0] sm:$0xff]
        %v904 = vld [vmem:[#allocation10 + $0xf8] sm:$0xff]
        %v905 = vld [vmem:[#allocation11] sm:$0x3]
        %v907 = vlaneseq
        %v908 = vshrl.u32 %v907, 7
        %v909 = vsub.s32 0, %v908
        %v910 = vrot.slane %v905, %v909
        %v911 = vlaneseq
        %v912 = vshrl.u32 %v911, 7
        %v913 = vsub.s32 1, %v912
        %v914 = vrot.slane %v905, %v913
        %v949 = vunpack.c.l.b16 %v873
        %v950 = vunpack.c.h.b16 %v873
        %v951 = vunpack.c.l.b16 %v874
        %v952 = vunpack.c.h.b16 %v874
        %v953 = vunpack.c.l.b16 %v875
        %v954 = vunpack.c.h.b16 %v875
        %v955 = vunpack.c.l.b16 %v876
        %v956 = vunpack.c.h.b16 %v876
        %v957 = vunpack.c.l.b16 %v877
        %v958 = vunpack.c.h.b16 %v877
        %v959 = vunpack.c.l.b16 %v878
        %v960 = vunpack.c.h.b16 %v878
        %v961 = vunpack.c.l.b16 %v879
        %v962 = vunpack.c.h.b16 %v879
        %v963 = vunpack.c.l.b16 %v880
        %v964 = vunpack.c.h.b16 %v880
        %v965 = vunpack.c.l.b16 %v881
        %v966 = vunpack.c.h.b16 %v881
        %v967 = vunpack.c.l.b16 %v882
        %v968 = vunpack.c.h.b16 %v882
        %v969 = vunpack.c.l.b16 %v883
        %v970 = vunpack.c.h.b16 %v883
        %v971 = vunpack.c.l.b16 %v884
        %v972 = vunpack.c.h.b16 %v884
        %v973 = vunpack.c.l.b16 %v885
        %v974 = vunpack.c.h.b16 %v885
        %v975 = vunpack.c.l.b16 %v886
        %v976 = vunpack.c.h.b16 %v886
        %v977 = vunpack.c.l.b16 %v887
        %v978 = vunpack.c.h.b16 %v887
        %v979 = vunpack.c.l.b16 %v888
        %v980 = vunpack.c.h.b16 %v888
        %v981 = vunpack.c.l.b16 %v889
        %v982 = vunpack.c.h.b16 %v889
        %v983 = vunpack.c.l.b16 %v890
        %v984 = vunpack.c.h.b16 %v890
        %v985 = vunpack.c.l.b16 %v891
        %v986 = vunpack.c.h.b16 %v891
        %v987 = vunpack.c.l.b16 %v892
        %v988 = vunpack.c.h.b16 %v892
        %v989 = vunpack.c.l.b16 %v893
        %v990 = vunpack.c.h.b16 %v893
        %v991 = vunpack.c.l.b16 %v894
        %v992 = vunpack.c.h.b16 %v894
        %v993 = vunpack.c.l.b16 %v895
        %v994 = vunpack.c.h.b16 %v895
        %v995 = vunpack.c.l.b16 %v896
        %v996 = vunpack.c.h.b16 %v896
        %v997 = vunpack.c.l.b16 %v897
        %v998 = vunpack.c.h.b16 %v897
        %v999 = vunpack.c.l.b16 %v898
        %v1000 = vunpack.c.h.b16 %v898
        %v1001 = vunpack.c.l.b16 %v899
        %v1002 = vunpack.c.h.b16 %v899
        %v1003 = vunpack.c.l.b16 %v900
        %v1004 = vunpack.c.h.b16 %v900
        %v1005 = vunpack.c.l.b16 %v901
        %v1006 = vunpack.c.h.b16 %v901
        %v1007 = vunpack.c.l.b16 %v902
        %v1008 = vunpack.c.h.b16 %v902
        %v1009 = vunpack.c.l.b16 %v903
        %v1010 = vunpack.c.h.b16 %v903
        %v1011 = vunpack.c.l.b16 %v904
        %v1012 = vunpack.c.h.b16 %v904
        %v1013 = vpack.c.b16 %v951, %v949
        %v1014 = vpack.c.b16 %v952, %v950
        %v1015 = vpack.c.b16 %v955, %v953
        %v1016 = vpack.c.b16 %v956, %v954
        %v1017 = vpack.c.b16 %v959, %v957
        %v1018 = vpack.c.b16 %v960, %v958
        %v1019 = vpack.c.b16 %v963, %v961
        %v1020 = vpack.c.b16 %v964, %v962
        %v1021 = vpack.c.b16 %v967, %v965
        %v1022 = vpack.c.b16 %v968, %v966
        %v1023 = vpack.c.b16 %v971, %v969
        %v1024 = vpack.c.b16 %v972, %v970
        %v1025 = vpack.c.b16 %v975, %v973
        %v1026 = vpack.c.b16 %v976, %v974
        %v1027 = vpack.c.b16 %v979, %v977
        %v1028 = vpack.c.b16 %v980, %v978
        %v1029 = vpack.c.b16 %v983, %v981
        %v1030 = vpack.c.b16 %v984, %v982
        %v1031 = vpack.c.b16 %v987, %v985
        %v1032 = vpack.c.b16 %v988, %v986
        %v1033 = vpack.c.b16 %v991, %v989
        %v1034 = vpack.c.b16 %v992, %v990
        %v1035 = vpack.c.b16 %v995, %v993
        %v1036 = vpack.c.b16 %v996, %v994
        %v1037 = vpack.c.b16 %v999, %v997
        %v1038 = vpack.c.b16 %v1000, %v998
        %v1039 = vpack.c.b16 %v1003, %v1001
        %v1040 = vpack.c.b16 %v1004, %v1002
        %v1041 = vpack.c.b16 %v1007, %v1005
        %v1042 = vpack.c.b16 %v1008, %v1006
        %v1043 = vpack.c.b16 %v1011, %v1009
        %v1044 = vpack.c.b16 %v1012, %v1010
        %1077 = vmatprep.subr.bf16.mxu0 %v1014
        %1078 = vmatpush1.bf16.msra.mxu0 %v1013
        %1079 = vmatprep.subr.bf16.mxu0 %v1016
        %1080 = vmatpush1.bf16.msra.mxu0 %v1015
        %1081 = vmatprep.subr.bf16.mxu0 %v1018
        %1082 = vmatpush1.bf16.msra.mxu0 %v1017
        %1083 = vmatprep.subr.bf16.mxu0 %v1020
        %1084 = vmatpush1.bf16.msra.mxu0 %v1019
        %1085 = vmatprep.subr.bf16.mxu0 %v1022
        %1086 = vmatpush1.bf16.msra.mxu0 %v1021
        %1087 = vmatprep.subr.bf16.mxu0 %v1024
        %1088 = vmatpush1.bf16.msra.mxu0 %v1023
        %1089 = vmatprep.subr.bf16.mxu0 %v1026
        %1090 = vmatpush1.bf16.msra.mxu0 %v1025
        %1091 = vmatprep.subr.bf16.mxu0 %v1028
        %1092 = vmatpush1.bf16.msra.mxu0 %v1027
        %1093 = vmatprep.subr.bf16.mxu0 %v1030
        %1094 = vmatpush1.bf16.msra.mxu0 %v1029
        %1095 = vmatprep.subr.bf16.mxu0 %v1032
        %1096 = vmatpush1.bf16.msra.mxu0 %v1031
        %1097 = vmatprep.subr.bf16.mxu0 %v1034
        %1098 = vmatpush1.bf16.msra.mxu0 %v1033
        %1099 = vmatprep.subr.bf16.mxu0 %v1036
        %1100 = vmatpush1.bf16.msra.mxu0 %v1035
        %1101 = vmatprep.subr.bf16.mxu0 %v1038
        %1102 = vmatpush1.bf16.msra.mxu0 %v1037
        %1103 = vmatprep.subr.bf16.mxu0 %v1040
        %1104 = vmatpush1.bf16.msra.mxu0 %v1039
        %1105 = vmatprep.subr.bf16.mxu0 %v1042
        %1106 = vmatpush1.bf16.msra.mxu0 %v1041
        %1107 = vmatprep.subr.bf16.mxu0 %v1044
        %1108 = vmatpush1.bf16.msra.mxu0 %v1043
        %1109 = vmatprep.mubr.bf16.mxu0 %v627
        %1110 = vmatmul.mubr.bf16.gmra.mrb[0].mxu0 %v626
        %v1111 = vpop.f32.mrb[0].mxu0
        %v1112 = vadd.f32 %v910, %v1111
        %v1113 = vpop.f32.mrb[0].mxu0
        %v1114 = vadd.f32 %v914, %v1113
        %v1115 = vpop.f32.mrb[0].mxu0
        %v1116 = vpop.f32.mrb[0].mxu0
        %1117 = vdwg.mxu0
        %v1118 = vld [vmem:[#allocation13] sm:$0xff]
        %v1119 = vld [vmem:[#allocation13 + $0x8] sm:$0xff]
        %v1120 = vld [vmem:[#allocation13 + $0x10] sm:$0xff]
        %v1121 = vld [vmem:[#allocation13 + $0x18] sm:$0xff]
        %v1122 = vld [vmem:[#allocation13 + $0x20] sm:$0xff]
        %v1123 = vld [vmem:[#allocation13 + $0x28] sm:$0xff]
        %v1124 = vld [vmem:[#allocation13 + $0x30] sm:$0xff]
        %v1125 = vld [vmem:[#allocation13 + $0x38] sm:$0xff]
        %v1126 = vld [vmem:[#allocation13 + $0x40] sm:$0xff]
        %v1127 = vld [vmem:[#allocation13 + $0x48] sm:$0xff]
        %v1128 = vld [vmem:[#allocation13 + $0x50] sm:$0xff]
        %v1129 = vld [vmem:[#allocation13 + $0x58] sm:$0xff]
        %v1130 = vld [vmem:[#allocation13 + $0x60] sm:$0xff]
        %v1131 = vld [vmem:[#allocation13 + $0x68] sm:$0xff]
        %v1132 = vld [vmem:[#allocation13 + $0x70] sm:$0xff]
        %v1133 = vld [vmem:[#allocation13 + $0x78] sm:$0xff]
        %v1134 = vld [vmem:[#allocation13 + $0x80] sm:$0xff]
        %v1135 = vld [vmem:[#allocation13 + $0x88] sm:$0xff]
        %v1136 = vld [vmem:[#allocation13 + $0x90] sm:$0xff]
        %v1137 = vld [vmem:[#allocation13 + $0x98] sm:$0xff]
        %v1138 = vld [vmem:[#allocation13 + $0xa0] sm:$0xff]
        %v1139 = vld [vmem:[#allocation13 + $0xa8] sm:$0xff]
        %v1140 = vld [vmem:[#allocation13 + $0xb0] sm:$0xff]
        %v1141 = vld [vmem:[#allocation13 + $0xb8] sm:$0xff]
        %v1142 = vld [vmem:[#allocation13 + $0xc0] sm:$0xff]
        %v1143 = vld [vmem:[#allocation13 + $0xc8] sm:$0xff]
        %v1144 = vld [vmem:[#allocation13 + $0xd0] sm:$0xff]
        %v1145 = vld [vmem:[#allocation13 + $0xd8] sm:$0xff]
        %v1146 = vld [vmem:[#allocation13 + $0xe0] sm:$0xff]
        %v1147 = vld [vmem:[#allocation13 + $0xe8] sm:$0xff]
        %v1148 = vld [vmem:[#allocation13 + $0xf0] sm:$0xff]
        %v1149 = vld [vmem:[#allocation13 + $0xf8] sm:$0xff]
        %v1150 = vld [vmem:[#allocation14] sm:$0x3]
        %v1152 = vlaneseq
        %v1153 = vshrl.u32 %v1152, 7
        %v1154 = vsub.s32 0, %v1153
        %v1155 = vrot.slane %v1150, %v1154
        %v1156 = vlaneseq
        %v1157 = vshrl.u32 %v1156, 7
        %v1158 = vsub.s32 1, %v1157
        %v1159 = vrot.slane %v1150, %v1158
        %v1194 = vunpack.c.l.b16 %v1118
        %v1195 = vunpack.c.h.b16 %v1118
        %v1196 = vunpack.c.l.b16 %v1119
        %v1197 = vunpack.c.h.b16 %v1119
        %v1198 = vunpack.c.l.b16 %v1120
        %v1199 = vunpack.c.h.b16 %v1120
        %v1200 = vunpack.c.l.b16 %v1121
        %v1201 = vunpack.c.h.b16 %v1121
        %v1202 = vunpack.c.l.b16 %v1122
        %v1203 = vunpack.c.h.b16 %v1122
        %v1204 = vunpack.c.l.b16 %v1123
        %v1205 = vunpack.c.h.b16 %v1123
        %v1206 = vunpack.c.l.b16 %v1124
        %v1207 = vunpack.c.h.b16 %v1124
        %v1208 = vunpack.c.l.b16 %v1125
        %v1209 = vunpack.c.h.b16 %v1125
        %v1210 = vunpack.c.l.b16 %v1126
        %v1211 = vunpack.c.h.b16 %v1126
        %v1212 = vunpack.c.l.b16 %v1127
        %v1213 = vunpack.c.h.b16 %v1127
        %v1214 = vunpack.c.l.b16 %v1128
        %v1215 = vunpack.c.h.b16 %v1128
        %v1216 = vunpack.c.l.b16 %v1129
        %v1217 = vunpack.c.h.b16 %v1129
        %v1218 = vunpack.c.l.b16 %v1130
        %v1219 = vunpack.c.h.b16 %v1130
        %v1220 = vunpack.c.l.b16 %v1131
        %v1221 = vunpack.c.h.b16 %v1131
        %v1222 = vunpack.c.l.b16 %v1132
        %v1223 = vunpack.c.h.b16 %v1132
        %v1224 = vunpack.c.l.b16 %v1133
        %v1225 = vunpack.c.h.b16 %v1133
        %v1226 = vunpack.c.l.b16 %v1134
        %v1227 = vunpack.c.h.b16 %v1134
        %v1228 = vunpack.c.l.b16 %v1135
        %v1229 = vunpack.c.h.b16 %v1135
        %v1230 = vunpack.c.l.b16 %v1136
        %v1231 = vunpack.c.h.b16 %v1136
        %v1232 = vunpack.c.l.b16 %v1137
        %v1233 = vunpack.c.h.b16 %v1137
        %v1234 = vunpack.c.l.b16 %v1138
        %v1235 = vunpack.c.h.b16 %v1138
        %v1236 = vunpack.c.l.b16 %v1139
        %v1237 = vunpack.c.h.b16 %v1139
        %v1238 = vunpack.c.l.b16 %v1140
        %v1239 = vunpack.c.h.b16 %v1140
        %v1240 = vunpack.c.l.b16 %v1141
        %v1241 = vunpack.c.h.b16 %v1141
        %v1242 = vunpack.c.l.b16 %v1142
        %v1243 = vunpack.c.h.b16 %v1142
        %v1244 = vunpack.c.l.b16 %v1143
        %v1245 = vunpack.c.h.b16 %v1143
        %v1246 = vunpack.c.l.b16 %v1144
        %v1247 = vunpack.c.h.b16 %v1144
        %v1248 = vunpack.c.l.b16 %v1145
        %v1249 = vunpack.c.h.b16 %v1145
        %v1250 = vunpack.c.l.b16 %v1146
        %v1251 = vunpack.c.h.b16 %v1146
        %v1252 = vunpack.c.l.b16 %v1147
        %v1253 = vunpack.c.h.b16 %v1147
        %v1254 = vunpack.c.l.b16 %v1148
        %v1255 = vunpack.c.h.b16 %v1148
        %v1256 = vunpack.c.l.b16 %v1149
        %v1257 = vunpack.c.h.b16 %v1149
        %v1258 = vpack.c.b16 %v1196, %v1194
        %v1259 = vpack.c.b16 %v1197, %v1195
        %v1260 = vpack.c.b16 %v1200, %v1198
        %v1261 = vpack.c.b16 %v1201, %v1199
        %v1262 = vpack.c.b16 %v1204, %v1202
        %v1263 = vpack.c.b16 %v1205, %v1203
        %v1264 = vpack.c.b16 %v1208, %v1206
        %v1265 = vpack.c.b16 %v1209, %v1207
        %v1266 = vpack.c.b16 %v1212, %v1210
        %v1267 = vpack.c.b16 %v1213, %v1211
        %v1268 = vpack.c.b16 %v1216, %v1214
        %v1269 = vpack.c.b16 %v1217, %v1215
        %v1270 = vpack.c.b16 %v1220, %v1218
        %v1271 = vpack.c.b16 %v1221, %v1219
        %v1272 = vpack.c.b16 %v1224, %v1222
        %v1273 = vpack.c.b16 %v1225, %v1223
        %v1274 = vpack.c.b16 %v1228, %v1226
        %v1275 = vpack.c.b16 %v1229, %v1227
        %v1276 = vpack.c.b16 %v1232, %v1230
        %v1277 = vpack.c.b16 %v1233, %v1231
        %v1278 = vpack.c.b16 %v1236, %v1234
        %v1279 = vpack.c.b16 %v1237, %v1235
        %v1280 = vpack.c.b16 %v1240, %v1238
        %v1281 = vpack.c.b16 %v1241, %v1239
        %v1282 = vpack.c.b16 %v1244, %v1242
        %v1283 = vpack.c.b16 %v1245, %v1243
        %v1284 = vpack.c.b16 %v1248, %v1246
        %v1285 = vpack.c.b16 %v1249, %v1247
        %v1286 = vpack.c.b16 %v1252, %v1250
        %v1287 = vpack.c.b16 %v1253, %v1251
        %v1288 = vpack.c.b16 %v1256, %v1254
        %v1289 = vpack.c.b16 %v1257, %v1255
        %1322 = vmatprep.subr.bf16.mxu0 %v1259
        %1323 = vmatpush1.bf16.msra.mxu0 %v1258
        %1324 = vmatprep.subr.bf16.mxu0 %v1261
        %1325 = vmatpush1.bf16.msra.mxu0 %v1260
        %1326 = vmatprep.subr.bf16.mxu0 %v1263
        %1327 = vmatpush1.bf16.msra.mxu0 %v1262
        %1328 = vmatprep.subr.bf16.mxu0 %v1265
        %1329 = vmatpush1.bf16.msra.mxu0 %v1264
        %1330 = vmatprep.subr.bf16.mxu0 %v1267
        %1331 = vmatpush1.bf16.msra.mxu0 %v1266
        %1332 = vmatprep.subr.bf16.mxu0 %v1269
        %1333 = vmatpush1.bf16.msra.mxu0 %v1268
        %1334 = vmatprep.subr.bf16.mxu0 %v1271
        %1335 = vmatpush1.bf16.msra.mxu0 %v1270
        %1336 = vmatprep.subr.bf16.mxu0 %v1273
        %1337 = vmatpush1.bf16.msra.mxu0 %v1272
        %1338 = vmatprep.subr.bf16.mxu0 %v1275
        %1339 = vmatpush1.bf16.msra.mxu0 %v1274
        %1340 = vmatprep.subr.bf16.mxu0 %v1277
        %1341 = vmatpush1.bf16.msra.mxu0 %v1276
        %1342 = vmatprep.subr.bf16.mxu0 %v1279
        %1343 = vmatpush1.bf16.msra.mxu0 %v1278
        %1344 = vmatprep.subr.bf16.mxu0 %v1281
        %1345 = vmatpush1.bf16.msra.mxu0 %v1280
        %1346 = vmatprep.subr.bf16.mxu0 %v1283
        %1347 = vmatpush1.bf16.msra.mxu0 %v1282
        %1348 = vmatprep.subr.bf16.mxu0 %v1285
        %1349 = vmatpush1.bf16.msra.mxu0 %v1284
        %1350 = vmatprep.subr.bf16.mxu0 %v1287
        %1351 = vmatpush1.bf16.msra.mxu0 %v1286
        %1352 = vmatprep.subr.bf16.mxu0 %v1289
        %1353 = vmatpush1.bf16.msra.mxu0 %v1288
        %1354 = vmatprep.mubr.bf16.mxu0 %v627
        %1355 = vmatmul.mubr.bf16.gmra.mrb[0].mxu0 %v626
        %v1356 = vpop.f32.mrb[0].mxu0
        %v1357 = vadd.f32 %v1155, %v1356
        %v1358 = vpop.f32.mrb[0].mxu0
        %v1359 = vadd.f32 %v1159, %v1358
        %v1360 = vpop.f32.mrb[0].mxu0
        %v1361 = vpop.f32.mrb[0].mxu0
        %1362 = vdwg.mxu0
        %v1363 = vpack.c.bf16 %v867, %v867
        %v1364 = vpack.c.bf16 %v1112, %v1112
        %v1365 = vpack.c.bf16 %v1357, %v1357
        %1366 = vmatprep.subr.bf16.mxu0 0
        %1367 = vmatpush1.bf16.xpose.msra.mxu0 %v1364
        %1368 = vmatprep.subr.bf16.mxu0 0
        %1369 = vmatpush1.bf16.xpose.msra.mxu0 0
        %1370 = vmatprep.subr.bf16.mxu0 0
        %1371 = vmatpush1.bf16.xpose.msra.mxu0 0
        %1372 = vmatprep.subr.bf16.mxu0 0
        %1373 = vmatpush1.bf16.xpose.msra.mxu0 0
        %1374 = vmatprep.subr.bf16.mxu0 0
        %1375 = vmatpush1.bf16.xpose.msra.mxu0 0
        %1376 = vmatprep.subr.bf16.mxu0 0
        %1377 = vmatpush1.bf16.xpose.msra.mxu0 0
        %1378 = vmatprep.subr.bf16.mxu0 0
        %1379 = vmatpush1.bf16.xpose.msra.mxu0 0
        %1380 = vmatprep.subr.bf16.mxu0 0
        %1381 = vmatpush1.bf16.xpose.msra.mxu0 0
        %1382 = vmatprep.subr.bf16.mxu0 0
        %1383 = vmatpush1.bf16.xpose.msra.mxu0 0
        %1384 = vmatprep.subr.bf16.mxu0 0
        %1385 = vmatpush1.bf16.xpose.msra.mxu0 0
        %1386 = vmatprep.subr.bf16.mxu0 0
        %1387 = vmatpush1.bf16.xpose.msra.mxu0 0
        %1388 = vmatprep.subr.bf16.mxu0 0
        %1389 = vmatpush1.bf16.xpose.msra.mxu0 0
        %1390 = vmatprep.subr.bf16.mxu0 0
        %1391 = vmatpush1.bf16.xpose.msra.mxu0 0
        %1392 = vmatprep.subr.bf16.mxu0 0
        %1393 = vmatpush1.bf16.xpose.msra.mxu0 0
        %1394 = vmatprep.subr.bf16.mxu0 0
        %1395 = vmatpush1.bf16.xpose.msra.mxu0 0
        %1396 = vmatprep.subr.bf16.mxu0 0
        %1397 = vmatpush1.bf16.xpose.msra.mxu0 0
        %1398 = vmatprep.mubr.bf16.mxu0 0
        %1399 = vmatmul.mubr.bf16.gmra.mrb[0].mxu0 %v1363
        %v1400 = vpop.f32.mrb[0].mxu0
        %v1401 = vadd.f32 0.0, %v1400
        %v1402 = vpop.f32.mrb[0].mxu0
        %v1403 = vpop.f32.mrb[0].mxu0
        %v1404 = vpop.f32.mrb[0].mxu0
        %1405 = vdwg.mxu0
        %v1406 = vmul.f32 %v1401, 0.088388346
        %vm1407 = vcmask 64512
        %v1408 = vsel %vm1407, %v1406, -inf
        %1409 = vmax.xlane.f32.xlu0 %v1408
        %v1410 = vpop.xlane.xlu0 %1409
        %v1411 = vsub.f32 %v1406, %v1410
        %v1412 = vmul.f32 %v1411, 1.442695
        %v1413 = vpow.pop %v1412
        %v1414 = vsel %vm1407, %v1413, 0.0
        %1415 = vadd.xlane.f32.xlu0 %v1414
        %v1416 = vpop.xlane.xlu0 %1415
        %v1417 = vrcp.pop %v1416
        %v1418 = vpack.c.bf16 %v1413, %v1413
        %v1420 = vsel %vm1407, %v1418, 0
        %vm1422 = vcmask 1043456
        %v1424 = vsel %vm1422, %v1365, 0
        %1426 = vmatprep.subr.bf16.mxu0 0
        %1427 = vmatpush1.bf16.msra.mxu0 %v1424
        %1428 = vmatprep.subr.bf16.mxu0 0
        %1429 = vmatpush1.bf16.msra.mxu0 0
        %1430 = vmatprep.subr.bf16.mxu0 0
        %1431 = vmatpush1.bf16.msra.mxu0 0
        %1432 = vmatprep.subr.bf16.mxu0 0
        %1433 = vmatpush1.bf16.msra.mxu0 0
        %1434 = vmatprep.subr.bf16.mxu0 0
        %1435 = vmatpush1.bf16.msra.mxu0 0
        %1436 = vmatprep.subr.bf16.mxu0 0
        %1437 = vmatpush1.bf16.msra.mxu0 0
        %1438 = vmatprep.subr.bf16.mxu0 0
        %1439 = vmatpush1.bf16.msra.mxu0 0
        %1440 = vmatprep.subr.bf16.mxu0 0
        %1441 = vmatpush1.bf16.msra.mxu0 0
        %1442 = vmatprep.subr.bf16.mxu0 0
        %1443 = vmatpush1.bf16.msra.mxu0 0
        %1444 = vmatprep.subr.bf16.mxu0 0
        %1445 = vmatpush1.bf16.msra.mxu0 0
        %1446 = vmatprep.subr.bf16.mxu0 0
        %1447 = vmatpush1.bf16.msra.mxu0 0
        %1448 = vmatprep.subr.bf16.mxu0 0
        %1449 = vmatpush1.bf16.msra.mxu0 0
        %1450 = vmatprep.subr.bf16.mxu0 0
        %1451 = vmatpush1.bf16.msra.mxu0 0
        %1452 = vmatprep.subr.bf16.mxu0 0
        %1453 = vmatpush1.bf16.msra.mxu0 0
        %1454 = vmatprep.subr.bf16.mxu0 0
        %1455 = vmatpush1.bf16.msra.mxu0 0
        %1456 = vmatprep.subr.bf16.mxu0 0
        %1457 = vmatpush1.bf16.msra.mxu0 0
        %1458 = vmatprep.mubr.bf16.mxu0 0
        %1459 = vmatmul.mubr.bf16.gmra.mrb[0].mxu0 %v1420
        %v1460 = vpop.f32.mrb[0].mxu0
        %v1461 = vadd.f32 0.0, %v1460
        %v1462 = vpop.f32.mrb[0].mxu0
        %v1463 = vpop.f32.mrb[0].mxu0
        %v1464 = vpop.f32.mrb[0].mxu0
        %1465 = vdwg.mxu0
        %v1466 = vmul.f32 %v1461, %v1417
        %v1467 = vpack.c.bf16 %v1466, %v1466
        %v1468 = vld [vmem:[#allocation16] sm:$0xff]
        %v1469 = vld [vmem:[#allocation16 + $0x8] sm:$0xff]
        %v1470 = vld [vmem:[#allocation16 + $0x10] sm:$0xff]
        %v1471 = vld [vmem:[#allocation16 + $0x18] sm:$0xff]
        %v1472 = vld [vmem:[#allocation16 + $0x20] sm:$0xff]
        %v1473 = vld [vmem:[#allocation16 + $0x28] sm:$0xff]
        %v1474 = vld [vmem:[#allocation16 + $0x30] sm:$0xff]
        %v1475 = vld [vmem:[#allocation16 + $0x38] sm:$0xff]
        %v1476 = vld [vmem:[#allocation16 + $0x40] sm:$0xff]
        %v1477 = vld [vmem:[#allocation16 + $0x48] sm:$0xff]
        %v1478 = vld [vmem:[#allocation16 + $0x50] sm:$0xff]
        %v1479 = vld [vmem:[#allocation16 + $0x58] sm:$0xff]
        %v1480 = vld [vmem:[#allocation16 + $0x60] sm:$0xff]
        %v1481 = vld [vmem:[#allocation16 + $0x68] sm:$0xff]
        %v1482 = vld [vmem:[#allocation16 + $0x70] sm:$0xff]
        %v1483 = vld [vmem:[#allocation16 + $0x78] sm:$0xff]
        %v1484 = vpack.c.bf16 %v869, %v869
        %v1485 = vpack.c.bf16 %v1114, %v1114
        %v1486 = vpack.c.bf16 %v1359, %v1359
        %1487 = vmatprep.subr.bf16.mxu0 0
        %1488 = vmatpush1.bf16.xpose.msra.mxu0 %v1485
        %1489 = vmatprep.subr.bf16.mxu0 0
        %1490 = vmatpush1.bf16.xpose.msra.mxu0 0
        %1491 = vmatprep.subr.bf16.mxu0 0
        %1492 = vmatpush1.bf16.xpose.msra.mxu0 0
        %1493 = vmatprep.subr.bf16.mxu0 0
        %1494 = vmatpush1.bf16.xpose.msra.mxu0 0
        %1495 = vmatprep.subr.bf16.mxu0 0
        %1496 = vmatpush1.bf16.xpose.msra.mxu0 0
        %1497 = vmatprep.subr.bf16.mxu0 0
        %1498 = vmatpush1.bf16.xpose.msra.mxu0 0
        %1499 = vmatprep.subr.bf16.mxu0 0
        %1500 = vmatpush1.bf16.xpose.msra.mxu0 0
        %1501 = vmatprep.subr.bf16.mxu0 0
        %1502 = vmatpush1.bf16.xpose.msra.mxu0 0
        %1503 = vmatprep.subr.bf16.mxu0 0
        %1504 = vmatpush1.bf16.xpose.msra.mxu0 0
        %1505 = vmatprep.subr.bf16.mxu0 0
        %1506 = vmatpush1.bf16.xpose.msra.mxu0 0
        %1507 = vmatprep.subr.bf16.mxu0 0
        %1508 = vmatpush1.bf16.xpose.msra.mxu0 0
        %1509 = vmatprep.subr.bf16.mxu0 0
        %1510 = vmatpush1.bf16.xpose.msra.mxu0 0
        %1511 = vmatprep.subr.bf16.mxu0 0
        %1512 = vmatpush1.bf16.xpose.msra.mxu0 0
        %1513 = vmatprep.subr.bf16.mxu0 0
        %1514 = vmatpush1.bf16.xpose.msra.mxu0 0
        %1515 = vmatprep.subr.bf16.mxu0 0
        %1516 = vmatpush1.bf16.xpose.msra.mxu0 0
        %1517 = vmatprep.subr.bf16.mxu0 0
        %1518 = vmatpush1.bf16.xpose.msra.mxu0 0
        %1519 = vmatprep.mubr.bf16.mxu0 0
        %1520 = vmatmul.mubr.bf16.gmra.mrb[0].mxu0 %v1484
        %v1521 = vpop.f32.mrb[0].mxu0
        %v1522 = vadd.f32 0.0, %v1521
        %v1523 = vpop.f32.mrb[0].mxu0
        %v1524 = vpop.f32.mrb[0].mxu0
        %v1525 = vpop.f32.mrb[0].mxu0
        %1526 = vdwg.mxu0
        %v1527 = vmul.f32 %v1522, 0.088388346
        %v1528 = vsel %vm1407, %v1527, -inf
        %1529 = vmax.xlane.f32.xlu0 %v1528
        %v1530 = vpop.xlane.xlu0 %1529
        %v1531 = vsub.f32 %v1527, %v1530
        %v1532 = vmul.f32 %v1531, 1.442695
        %v1533 = vpow.pop %v1532
        %v1534 = vsel %vm1407, %v1533, 0.0
        %1535 = vadd.xlane.f32.xlu0 %v1534
        %v1536 = vpop.xlane.xlu0 %1535
        %v1537 = vrcp.pop %v1536
        %v1538 = vpack.c.bf16 %v1533, %v1533
        %v1540 = vsel %vm1407, %v1538, 0
        %v1543 = vsel %vm1422, %v1486, 0
        %1545 = vmatprep.subr.bf16.mxu0 0
        %1546 = vmatpush1.bf16.msra.mxu0 %v1543
        %1547 = vmatprep.subr.bf16.mxu0 0
        %1548 = vmatpush1.bf16.msra.mxu0 0
        %1549 = vmatprep.subr.bf16.mxu0 0
        %1550 = vmatpush1.bf16.msra.mxu0 0
        %1551 = vmatprep.subr.bf16.mxu0 0
        %1552 = vmatpush1.bf16.msra.mxu0 0
        %1553 = vmatprep.subr.bf16.mxu0 0
        %1554 = vmatpush1.bf16.msra.mxu0 0
        %1555 = vmatprep.subr.bf16.mxu0 0
        %1556 = vmatpush1.bf16.msra.mxu0 0
        %1557 = vmatprep.subr.bf16.mxu0 0
        %1558 = vmatpush1.bf16.msra.mxu0 0
        %1559 = vmatprep.subr.bf16.mxu0 0
        %1560 = vmatpush1.bf16.msra.mxu0 0
        %1561 = vmatprep.subr.bf16.mxu0 0
        %1562 = vmatpush1.bf16.msra.mxu0 0
        %1563 = vmatprep.subr.bf16.mxu0 0
        %1564 = vmatpush1.bf16.msra.mxu0 0
        %1565 = vmatprep.subr.bf16.mxu0 0
        %1566 = vmatpush1.bf16.msra.mxu0 0
        %1567 = vmatprep.subr.bf16.mxu0 0
        %1568 = vmatpush1.bf16.msra.mxu0 0
        %1569 = vmatprep.subr.bf16.mxu0 0
        %1570 = vmatpush1.bf16.msra.mxu0 0
        %1571 = vmatprep.subr.bf16.mxu0 0
        %1572 = vmatpush1.bf16.msra.mxu0 0
        %1573 = vmatprep.subr.bf16.mxu0 0
        %1574 = vmatpush1.bf16.msra.mxu0 0
        %1575 = vmatprep.subr.bf16.mxu0 0
        %1576 = vmatpush1.bf16.msra.mxu0 0
        %1577 = vmatprep.mubr.bf16.mxu0 0
        %1578 = vmatmul.mubr.bf16.gmra.mrb[0].mxu0 %v1540
        %v1579 = vpop.f32.mrb[0].mxu0
        %v1580 = vadd.f32 0.0, %v1579
        %v1581 = vpop.f32.mrb[0].mxu0
        %v1582 = vpop.f32.mrb[0].mxu0
        %v1583 = vpop.f32.mrb[0].mxu0
        %1584 = vdwg.mxu0
        %v1585 = vmul.f32 %v1580, %v1537
        %v1586 = vpack.c.bf16 %v1585, %v1585
        %v1587 = vld [vmem:[#allocation16 + $0x80] sm:$0xff]
        %v1588 = vld [vmem:[#allocation16 + $0x88] sm:$0xff]
        %v1589 = vld [vmem:[#allocation16 + $0x90] sm:$0xff]
        %v1590 = vld [vmem:[#allocation16 + $0x98] sm:$0xff]
        %v1591 = vld [vmem:[#allocation16 + $0xa0] sm:$0xff]
        %v1592 = vld [vmem:[#allocation16 + $0xa8] sm:$0xff]
        %v1593 = vld [vmem:[#allocation16 + $0xb0] sm:$0xff]
        %v1594 = vld [vmem:[#allocation16 + $0xb8] sm:$0xff]
        %v1595 = vld [vmem:[#allocation16 + $0xc0] sm:$0xff]
        %v1596 = vld [vmem:[#allocation16 + $0xc8] sm:$0xff]
        %v1597 = vld [vmem:[#allocation16 + $0xd0] sm:$0xff]
        %v1598 = vld [vmem:[#allocation16 + $0xd8] sm:$0xff]
        %v1599 = vld [vmem:[#allocation16 + $0xe0] sm:$0xff]
        %v1600 = vld [vmem:[#allocation16 + $0xe8] sm:$0xff]
        %v1601 = vld [vmem:[#allocation16 + $0xf0] sm:$0xff]
        %v1602 = vld [vmem:[#allocation16 + $0xf8] sm:$0xff]
        %v1619 = vunpack.c.l.b16 %v1587
        %v1620 = vunpack.c.h.b16 %v1587
        %v1621 = vunpack.c.l.b16 %v1588
        %v1622 = vunpack.c.h.b16 %v1588
        %v1623 = vunpack.c.l.b16 %v1589
        %v1624 = vunpack.c.h.b16 %v1589
        %v1625 = vunpack.c.l.b16 %v1590
        %v1626 = vunpack.c.h.b16 %v1590
        %v1627 = vunpack.c.l.b16 %v1591
        %v1628 = vunpack.c.h.b16 %v1591
        %v1629 = vunpack.c.l.b16 %v1592
        %v1630 = vunpack.c.h.b16 %v1592
        %v1631 = vunpack.c.l.b16 %v1593
        %v1632 = vunpack.c.h.b16 %v1593
        %v1633 = vunpack.c.l.b16 %v1594
        %v1634 = vunpack.c.h.b16 %v1594
        %v1635 = vunpack.c.l.b16 %v1595
        %v1636 = vunpack.c.h.b16 %v1595
        %v1637 = vunpack.c.l.b16 %v1596
        %v1638 = vunpack.c.h.b16 %v1596
        %v1639 = vunpack.c.l.b16 %v1597
        %v1640 = vunpack.c.h.b16 %v1597
        %v1641 = vunpack.c.l.b16 %v1598
        %v1642 = vunpack.c.h.b16 %v1598
        %v1643 = vunpack.c.l.b16 %v1599
        %v1644 = vunpack.c.h.b16 %v1599
        %v1645 = vunpack.c.l.b16 %v1600
        %v1646 = vunpack.c.h.b16 %v1600
        %v1647 = vunpack.c.l.b16 %v1601
        %v1648 = vunpack.c.h.b16 %v1601
        %v1649 = vunpack.c.l.b16 %v1602
        %v1650 = vunpack.c.h.b16 %v1602
        %v1651 = vpack.c.b16 %v1621, %v1619
        %v1652 = vpack.c.b16 %v1622, %v1620
        %v1653 = vpack.c.b16 %v1625, %v1623
        %v1654 = vpack.c.b16 %v1626, %v1624
        %v1655 = vpack.c.b16 %v1629, %v1627
        %v1656 = vpack.c.b16 %v1630, %v1628
        %v1657 = vpack.c.b16 %v1633, %v1631
        %v1658 = vpack.c.b16 %v1634, %v1632
        %v1659 = vpack.c.b16 %v1637, %v1635
        %v1660 = vpack.c.b16 %v1638, %v1636
        %v1661 = vpack.c.b16 %v1641, %v1639
        %v1662 = vpack.c.b16 %v1642, %v1640
        %v1663 = vpack.c.b16 %v1645, %v1643
        %v1664 = vpack.c.b16 %v1646, %v1644
        %v1665 = vpack.c.b16 %v1649, %v1647
        %v1666 = vpack.c.b16 %v1650, %v1648
        %1683 = vmatprep.subr.bf16.mxu0 %v1652
        %1684 = vmatpush1.bf16.msra.mxu0 %v1651
        %1685 = vmatprep.subr.bf16.mxu0 %v1654
        %1686 = vmatpush1.bf16.msra.mxu0 %v1653
        %1687 = vmatprep.subr.bf16.mxu0 %v1656
        %1688 = vmatpush1.bf16.msra.mxu0 %v1655
        %1689 = vmatprep.subr.bf16.mxu0 %v1658
        %1690 = vmatpush1.bf16.msra.mxu0 %v1657
        %1691 = vmatprep.subr.bf16.mxu0 %v1660
        %1692 = vmatpush1.bf16.msra.mxu0 %v1659
        %1693 = vmatprep.subr.bf16.mxu0 %v1662
        %1694 = vmatpush1.bf16.msra.mxu0 %v1661
        %1695 = vmatprep.subr.bf16.mxu0 %v1664
        %1696 = vmatpush1.bf16.msra.mxu0 %v1663
        %1697 = vmatprep.subr.bf16.mxu0 %v1666
        %1698 = vmatpush1.bf16.msra.mxu0 %v1665
        %1699 = vmatprep.subr.bf16.mxu0 0
        %1700 = vmatpush1.bf16.msra.mxu0 0
        %1701 = vmatprep.subr.bf16.mxu0 0
        %1702 = vmatpush1.bf16.msra.mxu0 0
        %1703 = vmatprep.subr.bf16.mxu0 0
        %1704 = vmatpush1.bf16.msra.mxu0 0
        %1705 = vmatprep.subr.bf16.mxu0 0
        %1706 = vmatpush1.bf16.msra.mxu0 0
        %1707 = vmatprep.subr.bf16.mxu0 0
        %1708 = vmatpush1.bf16.msra.mxu0 0
        %1709 = vmatprep.subr.bf16.mxu0 0
        %1710 = vmatpush1.bf16.msra.mxu0 0
        %1711 = vmatprep.subr.bf16.mxu0 0
        %1712 = vmatpush1.bf16.msra.mxu0 0
        %1713 = vmatprep.subr.bf16.mxu0 0
        %1714 = vmatpush1.bf16.msra.mxu0 0
        %1715 = vmatprep.mubr.bf16.mxu0 0
        %1716 = vmatmul.mubr.bf16.gmra.mrb[0].mxu0 %v1586
        %v1717 = vpop.f32.mrb[0].mxu0
        %v1718 = vadd.f32 0.0, %v1717
        %v1719 = vpop.f32.mrb[0].mxu0
        %v1720 = vadd.f32 0.0, %v1719
        %v1721 = vpop.f32.mrb[0].mxu0
        %v1722 = vpop.f32.mrb[0].mxu0
        %1723 = vdwg.mxu0
        %v1740 = vunpack.c.l.b16 %v1468
        %v1741 = vunpack.c.h.b16 %v1468
        %v1742 = vunpack.c.l.b16 %v1469
        %v1743 = vunpack.c.h.b16 %v1469
        %v1744 = vunpack.c.l.b16 %v1470
        %v1745 = vunpack.c.h.b16 %v1470
        %v1746 = vunpack.c.l.b16 %v1471
        %v1747 = vunpack.c.h.b16 %v1471
        %v1748 = vunpack.c.l.b16 %v1472
        %v1749 = vunpack.c.h.b16 %v1472
        %v1750 = vunpack.c.l.b16 %v1473
        %v1751 = vunpack.c.h.b16 %v1473
        %v1752 = vunpack.c.l.b16 %v1474
        %v1753 = vunpack.c.h.b16 %v1474
        %v1754 = vunpack.c.l.b16 %v1475
        %v1755 = vunpack.c.h.b16 %v1475
        %v1756 = vunpack.c.l.b16 %v1476
        %v1757 = vunpack.c.h.b16 %v1476
        %v1758 = vunpack.c.l.b16 %v1477
        %v1759 = vunpack.c.h.b16 %v1477
        %v1760 = vunpack.c.l.b16 %v1478
        %v1761 = vunpack.c.h.b16 %v1478
        %v1762 = vunpack.c.l.b16 %v1479
        %v1763 = vunpack.c.h.b16 %v1479
        %v1764 = vunpack.c.l.b16 %v1480
        %v1765 = vunpack.c.h.b16 %v1480
        %v1766 = vunpack.c.l.b16 %v1481
        %v1767 = vunpack.c.h.b16 %v1481
        %v1768 = vunpack.c.l.b16 %v1482
        %v1769 = vunpack.c.h.b16 %v1482
        %v1770 = vunpack.c.l.b16 %v1483
        %v1771 = vunpack.c.h.b16 %v1483
        %v1772 = vpack.c.b16 %v1742, %v1740
        %v1773 = vpack.c.b16 %v1743, %v1741
        %v1774 = vpack.c.b16 %v1746, %v1744
        %v1775 = vpack.c.b16 %v1747, %v1745
        %v1776 = vpack.c.b16 %v1750, %v1748
        %v1777 = vpack.c.b16 %v1751, %v1749
        %v1778 = vpack.c.b16 %v1754, %v1752
        %v1779 = vpack.c.b16 %v1755, %v1753
        %v1780 = vpack.c.b16 %v1758, %v1756
        %v1781 = vpack.c.b16 %v1759, %v1757
        %v1782 = vpack.c.b16 %v1762, %v1760
        %v1783 = vpack.c.b16 %v1763, %v1761
        %v1784 = vpack.c.b16 %v1766, %v1764
        %v1785 = vpack.c.b16 %v1767, %v1765
        %v1786 = vpack.c.b16 %v1770, %v1768
        %v1787 = vpack.c.b16 %v1771, %v1769
        %1804 = vmatprep.subr.bf16.mxu0 %v1773
        %1805 = vmatpush1.bf16.msra.mxu0 %v1772
        %1806 = vmatprep.subr.bf16.mxu0 %v1775
        %1807 = vmatpush1.bf16.msra.mxu0 %v1774
        %1808 = vmatprep.subr.bf16.mxu0 %v1777
        %1809 = vmatpush1.bf16.msra.mxu0 %v1776
        %1810 = vmatprep.subr.bf16.mxu0 %v1779
        %1811 = vmatpush1.bf16.msra.mxu0 %v1778
        %1812 = vmatprep.subr.bf16.mxu0 %v1781
        %1813 = vmatpush1.bf16.msra.mxu0 %v1780
        %1814 = vmatprep.subr.bf16.mxu0 %v1783
        %1815 = vmatpush1.bf16.msra.mxu0 %v1782
        %1816 = vmatprep.subr.bf16.mxu0 %v1785
        %1817 = vmatpush1.bf16.msra.mxu0 %v1784
        %1818 = vmatprep.subr.bf16.mxu0 %v1787
        %1819 = vmatpush1.bf16.msra.mxu0 %v1786
        %1820 = vmatprep.subr.bf16.mxu0 0
        %1821 = vmatpush1.bf16.msra.mxu0 0
        %1822 = vmatprep.subr.bf16.mxu0 0
        %1823 = vmatpush1.bf16.msra.mxu0 0
        %1824 = vmatprep.subr.bf16.mxu0 0
        %1825 = vmatpush1.bf16.msra.mxu0 0
        %1826 = vmatprep.subr.bf16.mxu0 0
        %1827 = vmatpush1.bf16.msra.mxu0 0
        %1828 = vmatprep.subr.bf16.mxu0 0
        %1829 = vmatpush1.bf16.msra.mxu0 0
        %1830 = vmatprep.subr.bf16.mxu0 0
        %1831 = vmatpush1.bf16.msra.mxu0 0
        %1832 = vmatprep.subr.bf16.mxu0 0
        %1833 = vmatpush1.bf16.msra.mxu0 0
        %1834 = vmatprep.subr.bf16.mxu0 0
        %1835 = vmatpush1.bf16.msra.mxu0 0
        %1836 = vmatprep.mubr.bf16.mxu0 0
        %1837 = vmatmul.mubr.bf16.gmra.mrb[0].mxu0 %v1467
        %v1838 = vpop.f32.mrb[0].mxu0
        %v1839 = vadd.f32 %v1718, %v1838
        %v1840 = vpop.f32.mrb[0].mxu0
        %v1841 = vadd.f32 %v1720, %v1840
        %v1842 = vpop.f32.mrb[0].mxu0
        %v1843 = vpop.f32.mrb[0].mxu0
        %1844 = vdwg.mxu0
        %v1845 = vld [vmem:[#allocation17] sm:$0x3]
        %v1847 = vlaneseq
        %v1848 = vshrl.u32 %v1847, 7
        %v1849 = vsub.s32 0, %v1848
        %v1850 = vrot.slane %v1845, %v1849
        %v1851 = vlaneseq
        %v1852 = vshrl.u32 %v1851, 7
        %v1853 = vsub.s32 1, %v1852
        %v1854 = vrot.slane %v1845, %v1853
        %v1857 = vadd.f32 %v1839, %v1850
        %v1858 = vadd.f32 %v1841, %v1854
        %v1859 = vadd.f32 %v620, %v1857
        %v1860 = vadd.f32 %v621, %v1858
        %v1861 = vadd.f32 %v1859, %v1860
        %1862 = vadd.xlane.f32.xlu0 %v1861
        %v1863 = vpop.xlane.xlu0 %1862
        %v1864 = vrcp.pop 256.0
        %v1865 = vmul.f32 %v1863, %v1864
        %v1866 = vsub.f32 %v1859, %v1865
        %v1867 = vsub.f32 %v1860, %v1865
        %v1868 = vmul.f32 %v1866, %v1866
        %v1869 = vmul.f32 %v1867, %v1867
        %v1870 = vadd.f32 %v1868, %v1869
        %1871 = vadd.xlane.f32.xlu0 %v1870
        %v1872 = vpop.xlane.xlu0 %1871
        %v1873 = vmul.f32 %v1872, %v1864
        %v1874 = vadd.f32 %v1873, 1e-06
        %v1875 = vrsqrt.pop %v1874
        %v1876 = vmul.f32 %v1866, %v1875
        %v1877 = vmul.f32 %v1867, %v1875
        %v1878 = vld [vmem:[#allocation19] sm:$0x3]
        %v1880 = vlaneseq
        %v1881 = vshrl.u32 %v1880, 7
        %v1882 = vsub.s32 0, %v1881
        %v1883 = vrot.slane %v1878, %v1882
        %v1884 = vlaneseq
        %v1885 = vshrl.u32 %v1884, 7
        %v1886 = vsub.s32 1, %v1885
        %v1887 = vrot.slane %v1878, %v1886
        %v1890 = vmul.f32 %v1876, %v1883
        %v1891 = vmul.f32 %v1877, %v1887
        %v1892 = vld [vmem:[#allocation20] sm:$0x3]
        %v1894 = vlaneseq
        %v1895 = vshrl.u32 %v1894, 7
        %v1896 = vsub.s32 0, %v1895
        %v1897 = vrot.slane %v1892, %v1896
        %v1898 = vlaneseq
        %v1899 = vshrl.u32 %v1898, 7
        %v1900 = vsub.s32 1, %v1899
        %v1901 = vrot.slane %v1892, %v1900
        %v1904 = vadd.f32 %v1890, %v1897
        %v1905 = vadd.f32 %v1891, %v1901
        %1906 = vst [vmem:[%s618] sm:$0xff] %v1904
        %1907 = vst [vmem:[%s618 + $0x8] sm:$0xff] %v1905
        %s1908 = sand.u32 %s323, 1
        %s1909 = scalar_lea.sflag [#allocation4], %s1908
        %s1910 = sand.u32 %s323, 1
        %s1911 = smul.addr %s1910, 16
        %s1912 = scalar_lea.vmem [#allocation22], %s1911
        // Predicated region
        $region117: #{tpu_custom_call.1} parent=67 // pred_check
          %p1913 = pneg %p333
        $region118: #{tpu_custom_call.1} parent=67 // pred_check_branch
          %1915 = sbr.rel (%p1913) target = $region120
        $region119: #{tpu_custom_call.1} parent=67 // pred_region
          %s1917 = ssub.s32 256, 256
          %1918 = vsyncadd %s1909, %s1917
          %s1919 = smul.addr %s42, 2
          %s1920 = smul.addr %s41, 2
          %s1921 = sadd.s32 %s1919, %s1920
          %s1922 = smul.addr %s1921, 128
          %s1923 = scalar_lea.hbm %s12, %s1922
          %s1925 = sshll.u32 %s1912, 4
          %s1926 = int_to_ptr.vmem [resolvable:$true] %s1925
          %1928 = dma.vmem_to_hbm [thread:$0]  %s1926, 256, %s1923, %s1909
        $region120: #{tpu_custom_call.1} parent=67 // pred_fallthru
          _
      $region68: #{tpu_custom_call.1} parent=5 // pred_fallthru
        _
      %p1929 = scmp.le.s32.totalorder 2, %s32
      // Predicated region
      $region121: #{tpu_custom_call.1} parent=5 // pred_check
        %p1930 = pneg %p1929
      $region122: #{tpu_custom_call.1} parent=5 // pred_check_branch
        %1932 = sbr.rel (%p1930) target = $region124
      $region123: #{tpu_custom_call.1} parent=5 // pred_region
        %s1933 = ssub.s32 %s32, 2
        // Predicated region
        $region125: #{tpu_custom_call.1} parent=123 // pred_check
          %p1934 = pneg %p339
        $region126: #{tpu_custom_call.1} parent=123 // pred_check_branch
          %1936 = sbr.rel (%p1934) target = $region128
        $region127: #{tpu_custom_call.1} parent=123 // pred_region
          %s1937 = sand.u32 %s324, 1
          %s1938 = scalar_lea.sflag [#allocation4], %s1937
          %s1939 = sand.u32 %s324, 1
          %s1940 = smul.addr %s1939, 16
          %s1941 = scalar_lea.vmem [#allocation22], %s1940
          %1942 = dma.done %s1938, 256
        $region128: #{tpu_custom_call.1} parent=123 // pred_fallthru
          _
      $region124: #{tpu_custom_call.1} parent=5 // pred_fallthru
        _
    $region6: #{tpu_custom_call.1} parent=1 // loop_footer
      %s36 = sadd.s32 1, %s32
    $region7: #{tpu_custom_call.1} parent=1 // loop_footer_branch
      %31 = sbr.rel target = $region3
    $region8: #{tpu_custom_call.1} parent=1 // loop_exit
      _
    %1943 = vsyncpa [#allocation3], 1
    %s1944 = scalar_lea.sflag [#allocation3], 1
    %1945 = vsyncpa %s1944, 1
    %1946 = vsyncpa [#allocation6], 1
    %s1947 = scalar_lea.sflag [#allocation6], 1
    %1948 = vsyncpa %s1947, 1
    %1949 = vsyncpa [#allocation9], 1
    %1950 = vsyncpa [#allocation12], 1
    %1951 = vsyncpa [#allocation15], 1
    %1952 = vsyncpa [#allocation18], 1
    %1953 = vsyncpa [#allocation21], 1
    %1954 = vsyncpa [#allocation4], 1
    %s1955 = scalar_lea.sflag [#allocation4], 1
    %1956 = vsyncpa %s1955, 1

</llo_original>
